<compile_context>
chip_gen: v5e
topology: v5e:2x2
jax: 0.10.0
libtpu: 0.0.40
codegen_flags: <defaults>
</compile_context>

<pallas_src>
import functools

import jax
import jax.numpy as jnp
from jax.experimental import pallas as pl
from jax.experimental.pallas import tpu as pltpu


_MXU_PAD = 256                         # pad node dim to the 256-wide MXU (v6e/v7x)
_FUSE_VMEM_BUDGET = 20 * 1024 * 1024   # fuse combine+bmm if estimate fits here
_VMEM_LIMIT = 32 * 1024 * 1024         # safe on v5e/v6e (128 MiB) and v7x (64 MiB)


# ------------------------------ helpers -------------------------------------


def _round_up(x, m):
    return ((x + m - 1) // m) * m


def _pick_tile(n, pref):
    """Largest power-of-two tile <= pref dividing n (n is a multiple of 256)."""
    t = pref
    while n % t != 0:
        t //= 2
    return t


def _pad_nodes(x, n_pad):
    """Zero-pad the last two (node) dims of x up to n_pad."""
    pads = [(0, 0)] * (x.ndim - 2) + [
        (0, n_pad - x.shape[-2]),
        (0, n_pad - x.shape[-1]),
    ]
    if any(p != (0, 0) for p in pads):
        x = jnp.pad(x, pads)
    return x


def _smem_spec():
    return pl.BlockSpec(memory_space=pltpu.MemorySpace.SMEM)


def _combine_slab(a_ref, w_ref, c, cin):
    """sum_i w[c, i] * A[i] over the current tile; bf16 input, f32 accumulate."""
    acc = a_ref[0].astype(jnp.float32) * w_ref[c, 0]
    for i in range(1, cin):
        acc = acc + a_ref[i].astype(jnp.float32) * w_ref[c, i]
    return acc


# ------------------------ fused combine + matmul ------------------------------


def _fused_first_kernel(w1_ref, w2_ref, a_ref, o_ref, lhs_sc, rhs_sc, *, cin):
    c = pl.program_id(0)
    lhs_sc[...] = _combine_slab(a_ref, w1_ref, c, cin).astype(lhs_sc.dtype)
    rhs_sc[...] = _combine_slab(a_ref, w2_ref, c, cin).astype(rhs_sc.dtype)
    o_ref[...] = jnp.dot(lhs_sc[...], rhs_sc[...],
                         preferred_element_type=jnp.float32).astype(o_ref.dtype)


def _fused_not_first_kernel(w1_ref, a_ref, h_ref, o_ref, rhs_sc, *, cin):
    c = pl.program_id(0)
    rhs_sc[...] = _combine_slab(a_ref, w1_ref, c, cin).astype(rhs_sc.dtype)
    o_ref[...] = jnp.dot(h_ref[...], rhs_sc[...],
                         preferred_element_type=jnp.float32).astype(o_ref.dtype)


def _fused_vmem_estimate(cin, np_, out_itemsize, n_scratch, has_h_in):
    n2 = np_ * np_
    est = 2 * cin * n2 * 2            # A bf16 block (double-buffered)
    est += 2 * n2 * out_itemsize      # output block (double-buffered)
    est += n_scratch * n2 * 2         # bf16 combine scratch
    est += n2 * 4                     # f32 combine temporary
    if has_h_in:
        est += 2 * n2 * 2             # H_in bf16 block (double-buffered)
    return est


def _fused_first(A_bf, sw1, sw2, out_dtype):
    Cin, Np, _ = A_bf.shape
    Cout = sw1.shape[0]
    itemsize = jnp.dtype(out_dtype).itemsize
    return pl.pallas_call(
        functools.partial(_fused_first_kernel, cin=Cin),
        out_shape=jax.ShapeDtypeStruct((Cout, Np, Np), out_dtype),
        grid=(Cout,),
        in_specs=[_smem_spec(), _smem_spec(),
                  pl.BlockSpec((Cin, Np, Np), lambda c: (0, 0, 0))],
        out_specs=pl.BlockSpec((pl.Squeezed(), Np, Np), lambda c: (c, 0, 0)),
        scratch_shapes=[pltpu.VMEM((Np, Np), jnp.bfloat16),
                        pltpu.VMEM((Np, Np), jnp.bfloat16)],
        compiler_params=pltpu.CompilerParams(
            dimension_semantics=("parallel",),
            vmem_limit_bytes=_VMEM_LIMIT),
        cost_estimate=pl.CostEstimate(
            flops=2 * Cout * Np ** 3 + 4 * Cout * Cin * Np * Np,
            transcendentals=0,
            bytes_accessed=Cin * Np * Np * 2 + Cout * Np * Np * itemsize),
    )(sw1, sw2, A_bf)


def _fused_not_first(A_bf, H_bf, sw1, out_dtype):
    Cin, Np, _ = A_bf.shape
    Cout = sw1.shape[0]
    itemsize = jnp.dtype(out_dtype).itemsize
    return pl.pallas_call(
        functools.partial(_fused_not_first_kernel, cin=Cin),
        out_shape=jax.ShapeDtypeStruct((Cout, Np, Np), out_dtype),
        grid=(Cout,),
        in_specs=[_smem_spec(),
                  pl.BlockSpec((Cin, Np, Np), lambda c: (0, 0, 0)),
                  pl.BlockSpec((pl.Squeezed(), Np, Np), lambda c: (c, 0, 0))],
        out_specs=pl.BlockSpec((pl.Squeezed(), Np, Np), lambda c: (c, 0, 0)),
        scratch_shapes=[pltpu.VMEM((Np, Np), jnp.bfloat16)],
        compiler_params=pltpu.CompilerParams(
            dimension_semantics=("parallel",),
            vmem_limit_bytes=_VMEM_LIMIT),
        cost_estimate=pl.CostEstimate(
            flops=2 * Cout * Np ** 3 + 2 * Cout * Cin * Np * Np,
            transcendentals=0,
            bytes_accessed=(Cin * Np * Np * 2 + Cout * Np * Np * 2
                            + Cout * Np * Np * itemsize)),
    )(sw1, A_bf, H_bf)


# --------------------------- tiled fallback: combine ---------------------------


def _combine2_kernel(w1_ref, w2_ref, a_ref, oa_ref, ob_ref, *, cin, cout):
    # One (channel, conv) slab at a time -> only a single f32 accumulator live.
    for c in range(cout):
        oa_ref[c] = _combine_slab(a_ref, w1_ref, c, cin).astype(oa_ref.dtype)
    for c in range(cout):
        ob_ref[c] = _combine_slab(a_ref, w2_ref, c, cin).astype(ob_ref.dtype)


def _combine1_kernel(w1_ref, a_ref, oa_ref, *, cin, cout):
    for c in range(cout):
        oa_ref[c] = _combine_slab(a_ref, w1_ref, c, cin).astype(oa_ref.dtype)


def _gt_conv_combine(A_bf, weights):
    """GTConv for 1 or 2 weight sets.

    A_bf: (Cin, Np, Np) bf16;  weights: list of (Cout, Cin) softmax'ed f32.
    Returns a list of (Cout, Np, Np) bf16 arrays (MXU-ready operands).
    """
    Cin, Np, _ = A_bf.shape
    Cout = weights[0].shape[0]
    n_w = len(weights)
    bt_r = _pick_tile(Np, 256)   # big, sublane-aligned slabs for this HBM-bound stage
    bt_c = _pick_tile(Np, 512)   # lane-dense (multiple of 128) stores

    kernel = functools.partial(
        _combine2_kernel if n_w == 2 else _combine1_kernel, cin=Cin, cout=Cout)

    outs = pl.pallas_call(
        kernel,
        out_shape=tuple(
            jax.ShapeDtypeStruct((Cout, Np, Np), jnp.bfloat16) for _ in range(n_w)),
        grid=(Np // bt_r, Np // bt_c),
        in_specs=[_smem_spec()] * n_w
        + [pl.BlockSpec((Cin, bt_r, bt_c), lambda i, j: (0, i, j))],
        out_specs=tuple(
            pl.BlockSpec((Cout, bt_r, bt_c), lambda i, j: (0, i, j))
            for _ in range(n_w)),
        compiler_params=pltpu.CompilerParams(
            dimension_semantics=("parallel", "parallel"),
            vmem_limit_bytes=_VMEM_LIMIT),
    )(*weights, A_bf)
    return list(outs)


# ------------------------ tiled fallback: batched matmul ------------------------


def _bmm_kernel_accum_out(lhs_ref, rhs_ref, out_ref):
    # Output block index (c,i,j) is constant across the k axis, so the f32 output
    # block is VMEM-resident across the reduction and acts as the accumulator
    # directly (no scratch buffer, no final copy).
    @pl.when(pl.program_id(3) == 0)
    def _init():
        out_ref[...] = jnp.zeros_like(out_ref)

    out_ref[...] += jnp.dot(lhs_ref[...], rhs_ref[...],
                            preferred_element_type=jnp.float32)


def _bmm_kernel_cast_out(lhs_ref, rhs_ref, out_ref, acc_ref):
    # bf16 output: keep the f32 accumulation in scratch and cast once at the end.
    @pl.when(pl.program_id(3) == 0)
    def _init():
        acc_ref[...] = jnp.zeros_like(acc_ref)

    acc_ref[...] += jnp.dot(lhs_ref[...], rhs_ref[...],
                            preferred_element_type=jnp.float32)

    @pl.when(pl.program_id(3) == pl.num_programs(3) - 1)
    def _store():
        out_ref[...] = acc_ref[...].astype(out_ref.dtype)


def _batched_matmul(lhs, rhs, out_dtype=jnp.float32):
    """out[c] = lhs[c] @ rhs[c]; bf16 operands, f32 accumulation."""
    C, Np, _ = lhs.shape
    tm = _pick_tile(Np, 512)
    tn = _pick_tile(Np, 512)
    tk = _pick_tile(Np, 1024)
    itemsize = jnp.dtype(out_dtype).itemsize
    # bytes_accessed including re-reads: lhs re-read per j tile, rhs per i tile.
    cost = pl.CostEstimate(
        flops=2 * C * Np ** 3,
        transcendentals=0,
        bytes_accessed=(C * Np * Np * 2 * (Np // tn)
                        + C * Np * Np * 2 * (Np // tm)
                        + C * Np * Np * itemsize))
    if jnp.dtype(out_dtype) == jnp.dtype(jnp.float32):
        kernel, scratch = _bmm_kernel_accum_out, []
    else:
        kernel, scratch = _bmm_kernel_cast_out, [pltpu.VMEM((tm, tn), jnp.float32)]
    return pl.pallas_call(
        kernel,
        out_shape=jax.ShapeDtypeStruct((C, Np, Np), out_dtype),
        grid_spec=pltpu.PrefetchScalarGridSpec(
            num_scalar_prefetch=0,
            grid=(C, Np // tm, Np // tn, Np // tk),
            in_specs=[
                pl.BlockSpec((pl.Squeezed(), tm, tk), lambda c, i, j, k: (c, i, k)),
                pl.BlockSpec((pl.Squeezed(), tk, tn), lambda c, i, j, k: (c, k, j)),
            ],
            out_specs=pl.BlockSpec((pl.Squeezed(), tm, tn),
                                   lambda c, i, j, k: (c, i, j)),
            scratch_shapes=scratch,
        ),
        compiler_params=pltpu.CompilerParams(
            dimension_semantics=("parallel", "parallel", "parallel", "arbitrary"),
            vmem_limit_bytes=_VMEM_LIMIT),
        cost_estimate=cost,
    )(lhs, rhs)


# ----------------------------- layer wrappers ---------------------------------


def gt_layer_first(A, w1, w2, h_dtype=jnp.float32, force_tiled=False):
    """GTLayer(first=True).forward(A) -> (H, [softmax(w1), softmax(w2)])."""
    Cin, N, _ = A.shape
    sw1 = jax.nn.softmax(w1.astype(jnp.float32), axis=1)   # (Cout, Cin)
    sw2 = jax.nn.softmax(w2.astype(jnp.float32), axis=1)

    Np = _round_up(max(N, _MXU_PAD), _MXU_PAD)
    A_bf = _pad_nodes(A.astype(jnp.bfloat16), Np)          # halve combine HBM read

    itemsize = jnp.dtype(h_dtype).itemsize
    fused = (not force_tiled
             and _fused_vmem_estimate(Cin, Np, itemsize, n_scratch=2,
                                      has_h_in=False) <= _FUSE_VMEM_BUDGET)
    if fused:
        H_p = _fused_first(A_bf, sw1, sw2, h_dtype)
    else:
        a_bf, b_bf = _gt_conv_combine(A_bf, [sw1, sw2])     # (Cout, Np, Np) bf16
        H_p = _batched_matmul(a_bf, b_bf, out_dtype=h_dtype)

    H = H_p[:, :N, :N]
    W = [sw1[:, :, None, None], sw2[:, :, None, None]]      # match torch shapes
    return H, W


def gt_layer_not_first(A, H_in, w1, h_dtype=jnp.float32, force_tiled=False):
    """GTLayer(first=False).forward(A, H_) -> (H, [softmax(w1)])."""
    Cin, N, _ = A.shape
    sw1 = jax.nn.softmax(w1.astype(jnp.float32), axis=1)

    Np = _round_up(max(N, _MXU_PAD), _MXU_PAD)
    A_bf = _pad_nodes(A.astype(jnp.bfloat16), Np)
    # No-op cast when the previous layer already emitted bf16 H.
    H_bf = _pad_nodes(H_in.astype(jnp.bfloat16), Np)

    itemsize = jnp.dtype(h_dtype).itemsize
    fused = (not force_tiled
             and _fused_vmem_estimate(Cin, Np, itemsize, n_scratch=1,
                                      has_h_in=True) <= _FUSE_VMEM_BUDGET)
    if fused:
        H_p = _fused_not_first(A_bf, H_bf, sw1, h_dtype)
    else:
        (a_bf,) = _gt_conv_combine(A_bf, [sw1])
        H_p = _batched_matmul(H_bf, a_bf, out_dtype=h_dtype)

    H = H_p[:, :N, :N]
    W = [sw1[:, :, None, None]]
    return H, W


# --------------------------------- main ---------------------------------------


if __name__ == "__main__":
    # num_edge=4 edge types, num_channels=2, 256 graph nodes (multiple of 256 -> no pad).
    in_channels, out_channels, N = 4, 2, 256

    key = jax.random.PRNGKey(0)
    k_a, k_w1, k_w2 = jax.random.split(key, 3)
    A = jax.random.normal(k_a, (in_channels, N, N), jnp.float32)
    w1 = jax.random.normal(k_w1, (out_channels, in_channels), jnp.float32)
    w2 = jax.random.normal(k_w2, (out_channels, in_channels), jnp.float32)

    # Pure-JAX reference with the same bf16 rounding the kernels apply (bf16 A read,
    # bf16 MXU operands, f32 accumulation).
    hi = jax.lax.Precision.HIGHEST
    A_r = A.astype(jnp.bfloat16).astype(jnp.float32)
    sw1 = jax.nn.softmax(w1, axis=1)
    sw2 = jax.nn.softmax(w2, axis=1)
    a_r = jnp.einsum("inm,oi->onm", A_r, sw1, precision=hi)
    a_r = a_r.astype(jnp.bfloat16).astype(jnp.float32)
    b_r = jnp.einsum("inm,oi->onm", A_r, sw2, precision=hi)
    b_r = b_r.astype(jnp.bfloat16).astype(jnp.float32)
    H1_ref = jnp.einsum("onk,okm->onm", a_r, b_r, precision=hi)

    # ---- layer 0 (first=True), fused path, bf16 H (it only feeds the next layer) ----
    H1, W1 = gt_layer_first(A, w1, w2, h_dtype=jnp.bfloat16)
    H1 = jax.block_until_ready(H1)
    assert H1.shape == (out_channels, N, N) and H1.dtype == jnp.bfloat16
    assert W1[0].shape == (out_channels, in_channels, 1, 1)
    assert W1[1].shape == (out_channels, in_channels, 1, 1)
    assert jnp.allclose(H1.astype(jnp.float32), H1_ref, atol=0.5, rtol=2e-2), \
        float(jnp.max(jnp.abs(H1.astype(jnp.float32) - H1_ref)))

    # ---- layer 1 (first=False), fused path, f32 H (final layer) ----
    # TODO(synk): GTN.normalization between layers (degree normalization of H) is
    #             standard XLA glue and is intentionally left outside Pallas.
    H2, W2 = gt_layer_not_first(A, H1, w1, h_dtype=jnp.float32)
    H2 = jax.block_until_ready(H2)
    H2_ref = jnp.einsum("onk,okm->onm", H1.astype(jnp.float32), a_r, precision=hi)
    assert H2.shape == (out_channels, N, N) and H2.dtype == jnp.float32
    assert jnp.allclose(H2, H2_ref, atol=5e-2, rtol=2e-2), \
        float(jnp.max(jnp.abs(H2 - H2_ref)))
    assert W2[0].shape == (out_channels, in_channels, 1, 1)

    # ---- tiled two-stage path coverage (forced past the fuse cutoff) ----
    H1_t, _ = gt_layer_first(A, w1, w2, h_dtype=jnp.float32, force_tiled=True)
    H1_t = jax.block_until_ready(H1_t)
    assert jnp.allclose(H1_t, H1_ref, atol=5e-2, rtol=2e-2), \
        float(jnp.max(jnp.abs(H1_t - H1_ref)))

    H2_t, _ = gt_layer_not_first(A, H1, w1, h_dtype=jnp.bfloat16, force_tiled=True)
    H2_t = jax.block_until_ready(H2_t)
    assert jnp.allclose(H2_t.astype(jnp.float32), H2_ref, atol=0.5, rtol=2e-2), \
        float(jnp.max(jnp.abs(H2_t.astype(jnp.float32) - H2_ref)))

    print("KERNEL_OK")
</pallas_src>

<mosaic_0001>
module attributes {stable_mosaic.version = 11 : i64} {
  func.func @_fused_first_kernel(%arg0: i32, %arg1: memref<2x4xf32, #tpu.memory_space<smem>>, %arg2: memref<2x4xf32, #tpu.memory_space<smem>>, %arg3: memref<4x256x256xbf16, #tpu.memory_space<vmem>>, %arg4: memref<1x256x256xbf16, #tpu.memory_space<vmem>>, %arg5: memref<256x256xbf16, #tpu.memory_space<vmem>>, %arg6: memref<256x256xbf16, #tpu.memory_space<vmem>>) attributes {dimension_semantics = [#tpu.dimension_semantics<parallel>], iteration_bounds = array<i64: 2>, scalar_prefetch = 0 : i64, scratch_operands = 2 : i64, tpu.core_type = #tpu.core_type<tc>, window_params = [{transform_indices = @transform_0, window_bounds = array<i64: 2, 4>}, {transform_indices = @transform_1, window_bounds = array<i64: 2, 4>}, {pipeline_mode = #tpu.pipeline_mode<synchronous>, transform_indices = @transform_2, window_bounds = array<i64: 4, 256, 256>}, {transform_indices = @transform_3, window_bounds = array<i64: 1, 256, 256>}]} {
    %c0 = arith.constant 0 : index
    %c0_0 = arith.constant 0 : index
    %c0_1 = arith.constant 0 : index
    %0 = vector.load %arg3[%c0, %c0_0, %c0_1] : memref<4x256x256xbf16, #tpu.memory_space<vmem>>, vector<1x256x256xbf16>
    %1 = vector.shape_cast %0 : vector<1x256x256xbf16> to vector<256x256xbf16>
    %2 = arith.extf %1 : vector<256x256xbf16> to vector<256x256xf32>
    %3 = arith.index_cast %arg0 : i32 to index
    %c0_2 = arith.constant 0 : index
    %4 = memref.load %arg1[%3, %c0_2] : memref<2x4xf32, #tpu.memory_space<smem>>
    %5 = vector.broadcast %4 : f32 to vector<256x256xf32>
    %6 = arith.mulf %2, %5 : vector<256x256xf32>
    %c1 = arith.constant 1 : index
    %c0_3 = arith.constant 0 : index
    %c0_4 = arith.constant 0 : index
    %7 = vector.load %arg3[%c1, %c0_3, %c0_4] : memref<4x256x256xbf16, #tpu.memory_space<vmem>>, vector<1x256x256xbf16>
    %8 = vector.shape_cast %7 : vector<1x256x256xbf16> to vector<256x256xbf16>
    %9 = arith.extf %8 : vector<256x256xbf16> to vector<256x256xf32>
    %10 = arith.index_cast %arg0 : i32 to index
    %c1_5 = arith.constant 1 : index
    %11 = memref.load %arg1[%10, %c1_5] : memref<2x4xf32, #tpu.memory_space<smem>>
    %12 = vector.broadcast %11 : f32 to vector<256x256xf32>
    %13 = arith.mulf %9, %12 : vector<256x256xf32>
    %14 = arith.addf %6, %13 : vector<256x256xf32>
    %c2 = arith.constant 2 : index
    %c0_6 = arith.constant 0 : index
    %c0_7 = arith.constant 0 : index
    %15 = vector.load %arg3[%c2, %c0_6, %c0_7] : memref<4x256x256xbf16, #tpu.memory_space<vmem>>, vector<1x256x256xbf16>
    %16 = vector.shape_cast %15 : vector<1x256x256xbf16> to vector<256x256xbf16>
    %17 = arith.extf %16 : vector<256x256xbf16> to vector<256x256xf32>
    %18 = arith.index_cast %arg0 : i32 to index
    %c2_8 = arith.constant 2 : index
    %19 = memref.load %arg1[%18, %c2_8] : memref<2x4xf32, #tpu.memory_space<smem>>
    %20 = vector.broadcast %19 : f32 to vector<256x256xf32>
    %21 = arith.mulf %17, %20 : vector<256x256xf32>
    %22 = arith.addf %14, %21 : vector<256x256xf32>
    %c3 = arith.constant 3 : index
    %c0_9 = arith.constant 0 : index
    %c0_10 = arith.constant 0 : index
    %23 = vector.load %arg3[%c3, %c0_9, %c0_10] : memref<4x256x256xbf16, #tpu.memory_space<vmem>>, vector<1x256x256xbf16>
    %24 = vector.shape_cast %23 : vector<1x256x256xbf16> to vector<256x256xbf16>
    %25 = arith.extf %24 : vector<256x256xbf16> to vector<256x256xf32>
    %26 = arith.index_cast %arg0 : i32 to index
    %c3_11 = arith.constant 3 : index
    %27 = memref.load %arg1[%26, %c3_11] : memref<2x4xf32, #tpu.memory_space<smem>>
    %28 = vector.broadcast %27 : f32 to vector<256x256xf32>
    %29 = arith.mulf %25, %28 : vector<256x256xf32>
    %30 = arith.addf %22, %29 : vector<256x256xf32>
    %31 = arith.truncf %30 : vector<256x256xf32> to vector<256x256xbf16>
    %c0_12 = arith.constant 0 : index
    %c0_13 = arith.constant 0 : index
    %32 = vector.load %arg5[%c0_12, %c0_13] : memref<256x256xbf16, #tpu.memory_space<vmem>>, vector<256x256xbf16>
    tpu.vector_store %arg5[%c0_12, %c0_13], %31 {strides = array<i32>} : memref<256x256xbf16, #tpu.memory_space<vmem>>, vector<256x256xbf16>,
    %c0_14 = arith.constant 0 : index
    %c0_15 = arith.constant 0 : index
    %c0_16 = arith.constant 0 : index
    %33 = vector.load %arg3[%c0_14, %c0_15, %c0_16] : memref<4x256x256xbf16, #tpu.memory_space<vmem>>, vector<1x256x256xbf16>
    %34 = vector.shape_cast %33 : vector<1x256x256xbf16> to vector<256x256xbf16>
    %35 = arith.extf %34 : vector<256x256xbf16> to vector<256x256xf32>
    %36 = arith.index_cast %arg0 : i32 to index
    %c0_17 = arith.constant 0 : index
    %37 = memref.load %arg2[%36, %c0_17] : memref<2x4xf32, #tpu.memory_space<smem>>
    %38 = vector.broadcast %37 : f32 to vector<256x256xf32>
    %39 = arith.mulf %35, %38 : vector<256x256xf32>
    %c1_18 = arith.constant 1 : index
    %c0_19 = arith.constant 0 : index
    %c0_20 = arith.constant 0 : index
    %40 = vector.load %arg3[%c1_18, %c0_19, %c0_20] : memref<4x256x256xbf16, #tpu.memory_space<vmem>>, vector<1x256x256xbf16>
    %41 = vector.shape_cast %40 : vector<1x256x256xbf16> to vector<256x256xbf16>
    %42 = arith.extf %41 : vector<256x256xbf16> to vector<256x256xf32>
    %43 = arith.index_cast %arg0 : i32 to index
    %c1_21 = arith.constant 1 : index
    %44 = memref.load %arg2[%43, %c1_21] : memref<2x4xf32, #tpu.memory_space<smem>>
    %45 = vector.broadcast %44 : f32 to vector<256x256xf32>
    %46 = arith.mulf %42, %45 : vector<256x256xf32>
    %47 = arith.addf %39, %46 : vector<256x256xf32>
    %c2_22 = arith.constant 2 : index
    %c0_23 = arith.constant 0 : index
    %c0_24 = arith.constant 0 : index
    %48 = vector.load %arg3[%c2_22, %c0_23, %c0_24] : memref<4x256x256xbf16, #tpu.memory_space<vmem>>, vector<1x256x256xbf16>
    %49 = vector.shape_cast %48 : vector<1x256x256xbf16> to vector<256x256xbf16>
    %50 = arith.extf %49 : vector<256x256xbf16> to vector<256x256xf32>
    %51 = arith.index_cast %arg0 : i32 to index
    %c2_25 = arith.constant 2 : index
    %52 = memref.load %arg2[%51, %c2_25] : memref<2x4xf32, #tpu.memory_space<smem>>
    %53 = vector.broadcast %52 : f32 to vector<256x256xf32>
    %54 = arith.mulf %50, %53 : vector<256x256xf32>
    %55 = arith.addf %47, %54 : vector<256x256xf32>
    %c3_26 = arith.constant 3 : index
    %c0_27 = arith.constant 0 : index
    %c0_28 = arith.constant 0 : index
    %56 = vector.load %arg3[%c3_26, %c0_27, %c0_28] : memref<4x256x256xbf16, #tpu.memory_space<vmem>>, vector<1x256x256xbf16>
    %57 = vector.shape_cast %56 : vector<1x256x256xbf16> to vector<256x256xbf16>
    %58 = arith.extf %57 : vector<256x256xbf16> to vector<256x256xf32>
    %59 = arith.index_cast %arg0 : i32 to index
    %c3_29 = arith.constant 3 : index
    %60 = memref.load %arg2[%59, %c3_29] : memref<2x4xf32, #tpu.memory_space<smem>>
    %61 = vector.broadcast %60 : f32 to vector<256x256xf32>
    %62 = arith.mulf %58, %61 : vector<256x256xf32>
    %63 = arith.addf %55, %62 : vector<256x256xf32>
    %64 = arith.truncf %63 : vector<256x256xf32> to vector<256x256xbf16>
    %c0_30 = arith.constant 0 : index
    %c0_31 = arith.constant 0 : index
    %65 = vector.load %arg6[%c0_30, %c0_31] : memref<256x256xbf16, #tpu.memory_space<vmem>>, vector<256x256xbf16>
    tpu.vector_store %arg6[%c0_30, %c0_31], %64 {strides = array<i32>} : memref<256x256xbf16, #tpu.memory_space<vmem>>, vector<256x256xbf16>,
    %c0_32 = arith.constant 0 : index
    %c0_33 = arith.constant 0 : index
    %66 = vector.load %arg5[%c0_32, %c0_33] : memref<256x256xbf16, #tpu.memory_space<vmem>>, vector<256x256xbf16>
    %c0_34 = arith.constant 0 : index
    %c0_35 = arith.constant 0 : index
    %67 = vector.load %arg6[%c0_34, %c0_35] : memref<256x256xbf16, #tpu.memory_space<vmem>>, vector<256x256xbf16>
    %cst = arith.constant dense<0.000000e+00> : vector<256x256xf32>
    %68 = tpu.matmul %66, %67, %cst {dimension_numbers = #tpu.dot_dimension_numbers<[1], [0], [0], [1], [0, 0, 1, 1], [], []>} : vector<256x256xbf16>, vector<256x256xbf16>, vector<256x256xf32> -> vector<256x256xf32>
    %69 = arith.truncf %68 : vector<256x256xf32> to vector<256x256xbf16>
    %c0_36 = arith.constant 0 : index
    %c0_37 = arith.constant 0 : index
    %c0_38 = arith.constant 0 : index
    %70 = vector.load %arg4[%c0_36, %c0_37, %c0_38] : memref<1x256x256xbf16, #tpu.memory_space<vmem>>, vector<1x256x256xbf16>
    %71 = vector.shape_cast %70 : vector<1x256x256xbf16> to vector<256x256xbf16>
    %72 = vector.shape_cast %69 : vector<256x256xbf16> to vector<1x256x256xbf16>
    tpu.vector_store %arg4[%c0_36, %c0_37, %c0_38], %72 {strides = array<i32>} : memref<1x256x256xbf16, #tpu.memory_space<vmem>>, vector<1x256x256xbf16>,
    return
  }
  func.func @transform_0(%arg0: i32) -> (i32, i32) {
    %c0_i32 = arith.constant 0 : i32
    %c0_i32_0 = arith.constant 0 : i32
    %c0_i32_1 = arith.constant 0 : i32
    return %c0_i32, %c0_i32_0 : i32, i32
  }
  func.func @transform_1(%arg0: i32) -> (i32, i32) {
    %c0_i32 = arith.constant 0 : i32
    %c0_i32_0 = arith.constant 0 : i32
    %c0_i32_1 = arith.constant 0 : i32
    return %c0_i32, %c0_i32_0 : i32, i32
  }
  func.func @transform_2(%arg0: i32) -> (i32, i32, i32) {
    %c0_i32 = arith.constant 0 : i32
    %c0_i32_0 = arith.constant 0 : i32
    %c0_i32_1 = arith.constant 0 : i32
    %c0_i32_2 = arith.constant 0 : i32
    return %c0_i32, %c0_i32_0, %c0_i32_1 : i32, i32, i32
  }
  func.func @transform_3(%arg0: i32) -> (i32, i32, i32) {
    %c0_i32 = arith.constant 0 : i32
    %c0_i32_0 = arith.constant 0 : i32
    %c0_i32_1 = arith.constant 0 : i32
    return %arg0, %c0_i32, %c0_i32_0 : i32, i32, i32
  }
}

</mosaic_0001>

<llo_original>
// kernel: tpu_custom_call.1
$region0: #{tpu_custom_call.1}
  #allocation0 [shape = 'u32[]', space=smem, size = 0x4, offset = 0x4, fixed_abs, tag = 'smem constant byte address 0x4 - core index']
  #allocation1 [shape = 'u32[72,128]{1,0:T(1,128)}', space=vmem, size = 0x9000, scoped, tag = 'internal scratch']
  #allocation2 [shape = 'bf16[256,256]{1,0:T(8,128)(2,1)}', space=vmem, size = 0x20000, scoped, tag = 'scratch operand']
  #allocation3 [shape = 'bf16[256,256]{1,0:T(8,128)(2,1)}', space=vmem, size = 0x20000, scoped, tag = 'scratch operand']
  %s0 = inlined_call_operand.hbm [shape: f32[2,4], index: 0, kind: input, shape index: {}]
  %s1 = inlined_call_operand.hbm [shape: f32[2,4], index: 1, kind: input, shape index: {}]
  %s2 = inlined_call_operand.hbm [shape: bf16[4,256,256], index: 2, kind: input, shape index: {}]
  %s3 = inlined_call_operand.hbm [shape: bf16[2,256,256], index: 3, kind: output, shape index: {}]
  %s4 = sld [smem:[#allocation0]]
  $region57: #{tpu_custom_call.1} parent=0
    _
  %s6 = ssub.s32 1, %s4
  %s7 = scalar_select 0, %s6, %s4
  $region1: #{tpu_custom_call.1} parent=0
    #allocation4 [shape = 'u8[1024]{0}', space=smem, size = 0x400, scoped, tag = 'input window, operand 0, single buffered']
    #allocation5 [shape = 's32[2]{0}', space=sflag, size = 0x8, scoped, tag = 'scoped memory for tpu_custom_call.1']
    #allocation6 [shape = 's32[2]{0}', space=sflag, size = 0x8, scoped, tag = 'scoped memory for tpu_custom_call.1']
    #allocation7 [shape = 's32[2]{0}', space=sflag, size = 0x8, scoped, tag = 'scoped memory for tpu_custom_call.1']
    #allocation8 [shape = 'u8[1024]{0}', space=smem, size = 0x400, scoped, tag = 'input window, operand 1, single buffered']
    #allocation9 [shape = 's32[1]{0}', space=sflag, size = 0x4, scoped, tag = 'scoped memory for tpu_custom_call.1']
    #allocation10 [shape = 'u8[524288]{0}', space=vmem, size = 0x80000, scoped, tag = 'input window, operand 2, single buffered']
    #allocation11 [shape = 'u8[262144]{0}', space=vmem, size = 0x40000, scoped, tag = 'output window, operand 0']
    %8 = vsyncpa [#allocation7], 0
    %9 = vsyncpa [#allocation9], 0
    %10 = vsyncpa [#allocation5], 0
    %11 = vsyncpa [#allocation6], 0
    %s12 = scalar_lea.sflag [#allocation6], 1
    %13 = vsyncpa %s12, 0
    loop: start=0, step=1, limit=4
    $region2: #{tpu_custom_call.1} parent=1 // loop_pre_header
      _
    $region3: #{tpu_custom_call.1} parent=1 // loop_header
      %s15 = sphi 0, %s19
      %p16 = scmp.ge.s32.totalorder %s15, 4
      %s23 = sphi 0, %s23
      %s25 = sphi 0, %s23
      %s26 = sphi 0, %s25
      %s40 = sphi 0, %s26
      %s44 = sphi 0, %s44
      %s46 = sphi 0, %s44
      %s47 = sphi 0, %s46
      %s61 = sphi 0, %s47
      %s65 = sphi 0, %s65
      %s67 = sphi 0, %s65
      %s68 = sphi 0, %s67
      %s82 = sphi 0, %s68
      %s88 = sphi 0, %s90
      %s91 = sphi 0, %s88
      %s92 = sphi 0, %s91
      %s108 = sphi 0, %s92
    $region4: #{tpu_custom_call.1} parent=1 // loop_header_branch
      %18 = sbr.rel (%p16) target = $region8
    $region5: #{tpu_custom_call.1} parent=1 // loop_body
      %s20 = ssub.s32 %s15, 1
      %s21 = ssub.s32 %s15, 2
      %s22 = sadd.s32 %s15, 1
      %s24 = sadd.s32 %s23, 1
      %p27 = scmp.eq.s32.totalorder %s15, 1
      %p28 = scmp.ne.s32.totalorder %s23, %s25
      %p29 = scmp.eq.s32.totalorder %s15, 0
      %p30 = por %p28, %p29
      %p31 = scmp.ne.s32.totalorder %s23, %s25
      %p32 = scmp.eq.s32.totalorder %s20, 1
      %p33 = por %p31, %p32
      %p34 = scmp.ne.s32.totalorder %s25, %s26
      %p35 = scmp.eq.s32.totalorder %s20, 0
      %p36 = por %p34, %p35
      %p37 = scmp.ne.s32.totalorder %s25, %s26
      %p38 = scmp.eq.s32.totalorder %s21, 1
      %p39 = por %p37, %p38
      %p41 = scmp.ne.s32.totalorder %s26, %s40
      %p42 = scmp.eq.s32.totalorder %s21, 0
      %p43 = por %p41, %p42
      %s45 = sadd.s32 %s44, 1
      %p48 = scmp.eq.s32.totalorder %s15, 1
      %p49 = scmp.ne.s32.totalorder %s44, %s46
      %p50 = scmp.eq.s32.totalorder %s15, 0
      %p51 = por %p49, %p50
      %p52 = scmp.ne.s32.totalorder %s44, %s46
      %p53 = scmp.eq.s32.totalorder %s20, 1
      %p54 = por %p52, %p53
      %p55 = scmp.ne.s32.totalorder %s46, %s47
      %p56 = scmp.eq.s32.totalorder %s20, 0
      %p57 = por %p55, %p56
      %p58 = scmp.ne.s32.totalorder %s46, %s47
      %p59 = scmp.eq.s32.totalorder %s21, 1
      %p60 = por %p58, %p59
      %p62 = scmp.ne.s32.totalorder %s47, %s61
      %p63 = scmp.eq.s32.totalorder %s21, 0
      %p64 = por %p62, %p63
      %s66 = sadd.s32 %s65, 1
      %p69 = scmp.eq.s32.totalorder %s15, 1
      %p70 = scmp.ne.s32.totalorder %s65, %s67
      %p71 = scmp.eq.s32.totalorder %s15, 0
      %p72 = por %p70, %p71
      %p73 = scmp.ne.s32.totalorder %s65, %s67
      %p74 = scmp.eq.s32.totalorder %s20, 1
      %p75 = por %p73, %p74
      %p76 = scmp.ne.s32.totalorder %s67, %s68
      %p77 = scmp.eq.s32.totalorder %s20, 0
      %p78 = por %p76, %p77
      %p79 = scmp.ne.s32.totalorder %s67, %s68
      %p80 = scmp.eq.s32.totalorder %s21, 1
      %p81 = por %p79, %p80
      %p83 = scmp.ne.s32.totalorder %s68, %s82
      %p84 = scmp.eq.s32.totalorder %s21, 0
      %p85 = por %p83, %p84
      %s86 = ssub.s32 %s15, %s22
      %p87 = scmp.eq.s32.totalorder %s86, 0
      %s89 = sadd.s32 %s88, 1
      %s90 = scalar_select %p87, %s88, %s89
      %p93 = pneg %p87
      %p94 = scmp.eq.s32.totalorder %s15, 1
      %p95 = por %p93, %p94
      %p96 = scmp.ne.s32.totalorder %s88, %s91
      %p97 = scmp.eq.s32.totalorder %s15, 0
      %p98 = por %p96, %p97
      %p99 = scmp.ne.s32.totalorder %s88, %s91
      %p100 = scmp.eq.s32.totalorder %s20, 1
      %p101 = por %p99, %p100
      %p102 = scmp.ne.s32.totalorder %s91, %s92
      %p103 = scmp.eq.s32.totalorder %s20, 0
      %p104 = por %p102, %p103
      %p105 = scmp.ne.s32.totalorder %s91, %s92
      %p106 = scmp.eq.s32.totalorder %s21, 1
      %p107 = por %p105, %p106
      %p109 = scmp.ne.s32.totalorder %s92, %s108
      %p110 = scmp.eq.s32.totalorder %s21, 0
      %p111 = por %p109, %p110
      %p112 = scmp.le.s32.totalorder 1, %s15
      %p113 = scmp.lt.s32.totalorder %s15, 3
      %p114 = pnand %p112, %p113
      %p115 = pneg %p114
      // Predicated region
      $region9: #{tpu_custom_call.1} parent=5 // pred_check
        _
      $region10: #{tpu_custom_call.1} parent=5 // pred_check_branch
        %117 = sbr.rel (%p114) target = $region12
      $region11: #{tpu_custom_call.1} parent=5 // pred_region
        %s118 = ssub.s32 %s15, 1
        // Predicated region
        $region13: #{tpu_custom_call.1} parent=11 // pred_check
          %p119 = pneg %p36
        $region14: #{tpu_custom_call.1} parent=11 // pred_check_branch
          %121 = sbr.rel (%p119) target = $region16
        $region15: #{tpu_custom_call.1} parent=11 // pred_region
          %123 = vsyncadd [#allocation7], 0
          %s125 = sshll.u32 %s0, 4
          %s126 = int_to_ptr.hbm [resolvable:$true] %s125
          %128 = dma.hbm_to_smem %s126, 32, [#allocation4], [#allocation7]
        $region16: #{tpu_custom_call.1} parent=11 // pred_fallthru
          _
        // Predicated region
        $region17: #{tpu_custom_call.1} parent=11 // pred_check
          %p129 = pneg %p57
        $region18: #{tpu_custom_call.1} parent=11 // pred_check_branch
          %131 = sbr.rel (%p129) target = $region20
        $region19: #{tpu_custom_call.1} parent=11 // pred_region
          %133 = vsyncadd [#allocation9], 0
          %s135 = sshll.u32 %s1, 4
          %s136 = int_to_ptr.hbm [resolvable:$true] %s135
          %138 = dma.hbm_to_smem %s136, 32, [#allocation8], [#allocation9]
        $region20: #{tpu_custom_call.1} parent=11 // pred_fallthru
          _
        // Predicated region
        $region21: #{tpu_custom_call.1} parent=11 // pred_check
          %p139 = pneg %p78
        $region22: #{tpu_custom_call.1} parent=11 // pred_check_branch
          %141 = sbr.rel (%p139) target = $region24
        $region23: #{tpu_custom_call.1} parent=11 // pred_region
          %143 = vsyncadd [#allocation5], 0
          %s144 = sshll.u32 %s2, 4
          %s145 = int_to_ptr.hbm [resolvable:$true] %s144
          %s146 = sshll.u32 [#allocation10], 4
          %s147 = int_to_ptr.vmem [resolvable:$true] %s146
          %152 = dma.hbm_to_vmem [thread:$0]  %s145, 16384, %s147, [#allocation5], 128, 128, 8
        $region24: #{tpu_custom_call.1} parent=11 // pred_fallthru
          _
      $region12: #{tpu_custom_call.1} parent=5 // pred_fallthru
        _
      %p153 = scmp.lt.s32.totalorder %s15, 2
      // Predicated region
      $region25: #{tpu_custom_call.1} parent=5 // pred_check
        %p154 = pneg %p153
      $region26: #{tpu_custom_call.1} parent=5 // pred_check_branch
        %156 = sbr.rel (%p154) target = $region28
      $region27: #{tpu_custom_call.1} parent=5 // pred_region
        _
      $region28: #{tpu_custom_call.1} parent=5 // pred_fallthru
        _
      %p157 = scmp.le.s32.totalorder 1, %s15
      %p158 = scmp.lt.s32.totalorder %s15, 3
      %p159 = pnand %p157, %p158
      %p160 = pneg %p159
      // Predicated region
      $region29: #{tpu_custom_call.1} parent=5 // pred_check
        _
      $region30: #{tpu_custom_call.1} parent=5 // pred_check_branch
        %162 = sbr.rel (%p159) target = $region32
      $region31: #{tpu_custom_call.1} parent=5 // pred_region
        %s163 = ssub.s32 %s15, 1
        // Predicated region
        $region33: #{tpu_custom_call.1} parent=31 // pred_check
          %p164 = pneg %p36
        $region34: #{tpu_custom_call.1} parent=31 // pred_check_branch
          %166 = sbr.rel (%p164) target = $region36
        $region35: #{tpu_custom_call.1} parent=31 // pred_region
          %168 = dma.done [#allocation7], 32
        $region36: #{tpu_custom_call.1} parent=31 // pred_fallthru
          _
        // Predicated region
        $region37: #{tpu_custom_call.1} parent=31 // pred_check
          %p169 = pneg %p57
        $region38: #{tpu_custom_call.1} parent=31 // pred_check_branch
          %171 = sbr.rel (%p169) target = $region40
        $region39: #{tpu_custom_call.1} parent=31 // pred_region
          %173 = dma.done [#allocation9], 32
        $region40: #{tpu_custom_call.1} parent=31 // pred_fallthru
          _
        // Predicated region
        $region41: #{tpu_custom_call.1} parent=31 // pred_check
          %p174 = pneg %p78
        $region42: #{tpu_custom_call.1} parent=31 // pred_check_branch
          %176 = sbr.rel (%p174) target = $region44
        $region43: #{tpu_custom_call.1} parent=31 // pred_region
          %178 = dma.done [#allocation5], 16384
        $region44: #{tpu_custom_call.1} parent=31 // pred_fallthru
          _
        %179 = sfence
        %p180 = pneg %p36
        %p181 = pneg %p33
        %p182 = pneg %p57
        %p183 = pneg %p54
        %p184 = pneg %p78
        %p185 = pneg %p75
        %p186 = pneg %p104
        %p187 = pneg %p101
        %s188 = sand.u32 %s91, 1
        %s189 = scalar_lea.sflag [#allocation6], %s188
        %s190 = sand.u32 %s91, 1
        %s191 = smul.addr %s190, 256
        %s192 = scalar_lea.vmem [#allocation11], %s191
        %v193 = vld [vmem:[#allocation10] sm:$0xff]
        %v194 = vld [vmem:[#allocation10 + $0x8] sm:$0xff]
        %v195 = vld [vmem:[#allocation10 + $0x10] sm:$0xff]
        %v196 = vld [vmem:[#allocation10 + $0x18] sm:$0xff]
        %v197 = vld [vmem:[#allocation10 + $0x20] sm:$0xff]
        %v198 = vld [vmem:[#allocation10 + $0x28] sm:$0xff]
        %v199 = vld [vmem:[#allocation10 + $0x30] sm:$0xff]
        %v200 = vld [vmem:[#allocation10 + $0x38] sm:$0xff]
        %v201 = vld [vmem:[#allocation10 + $0x40] sm:$0xff]
        %v202 = vld [vmem:[#allocation10 + $0x48] sm:$0xff]
        %v203 = vld [vmem:[#allocation10 + $0x50] sm:$0xff]
        %v204 = vld [vmem:[#allocation10 + $0x58] sm:$0xff]
        %v205 = vld [vmem:[#allocation10 + $0x60] sm:$0xff]
        %v206 = vld [vmem:[#allocation10 + $0x68] sm:$0xff]
        %v207 = vld [vmem:[#allocation10 + $0x70] sm:$0xff]
        %v208 = vld [vmem:[#allocation10 + $0x78] sm:$0xff]
        %v209 = vld [vmem:[#allocation10 + $0x80] sm:$0xff]
        %v210 = vld [vmem:[#allocation10 + $0x88] sm:$0xff]
        %v211 = vld [vmem:[#allocation10 + $0x90] sm:$0xff]
        %v212 = vld [vmem:[#allocation10 + $0x98] sm:$0xff]
        %v213 = vld [vmem:[#allocation10 + $0xa0] sm:$0xff]
        %v214 = vld [vmem:[#allocation10 + $0xa8] sm:$0xff]
        %v215 = vld [vmem:[#allocation10 + $0xb0] sm:$0xff]
        %v216 = vld [vmem:[#allocation10 + $0xb8] sm:$0xff]
        %v217 = vld [vmem:[#allocation10 + $0xc0] sm:$0xff]
        %v218 = vld [vmem:[#allocation10 + $0xc8] sm:$0xff]
        %v219 = vld [vmem:[#allocation10 + $0xd0] sm:$0xff]
        %v220 = vld [vmem:[#allocation10 + $0xd8] sm:$0xff]
        %v221 = vld [vmem:[#allocation10 + $0xe0] sm:$0xff]
        %v222 = vld [vmem:[#allocation10 + $0xe8] sm:$0xff]
        %v223 = vld [vmem:[#allocation10 + $0xf0] sm:$0xff]
        %v224 = vld [vmem:[#allocation10 + $0xf8] sm:$0xff]
        %v225 = vunpack.c.l.bf16 %v193
        %v226 = vunpack.c.h.bf16 %v193
        %v227 = vunpack.c.l.bf16 %v194
        %v228 = vunpack.c.h.bf16 %v194
        %v229 = vunpack.c.l.bf16 %v195
        %v230 = vunpack.c.h.bf16 %v195
        %v231 = vunpack.c.l.bf16 %v196
        %v232 = vunpack.c.h.bf16 %v196
        %v233 = vunpack.c.l.bf16 %v197
        %v234 = vunpack.c.h.bf16 %v197
        %v235 = vunpack.c.l.bf16 %v198
        %v236 = vunpack.c.h.bf16 %v198
        %v237 = vunpack.c.l.bf16 %v199
        %v238 = vunpack.c.h.bf16 %v199
        %v239 = vunpack.c.l.bf16 %v200
        %v240 = vunpack.c.h.bf16 %v200
        %v241 = vunpack.c.l.bf16 %v201
        %v242 = vunpack.c.h.bf16 %v201
        %v243 = vunpack.c.l.bf16 %v202
        %v244 = vunpack.c.h.bf16 %v202
        %v245 = vunpack.c.l.bf16 %v203
        %v246 = vunpack.c.h.bf16 %v203
        %v247 = vunpack.c.l.bf16 %v204
        %v248 = vunpack.c.h.bf16 %v204
        %v249 = vunpack.c.l.bf16 %v205
        %v250 = vunpack.c.h.bf16 %v205
        %v251 = vunpack.c.l.bf16 %v206
        %v252 = vunpack.c.h.bf16 %v206
        %v253 = vunpack.c.l.bf16 %v207
        %v254 = vunpack.c.h.bf16 %v207
        %v255 = vunpack.c.l.bf16 %v208
        %v256 = vunpack.c.h.bf16 %v208
        %v257 = vunpack.c.l.bf16 %v209
        %v258 = vunpack.c.h.bf16 %v209
        %v259 = vunpack.c.l.bf16 %v210
        %v260 = vunpack.c.h.bf16 %v210
        %v261 = vunpack.c.l.bf16 %v211
        %v262 = vunpack.c.h.bf16 %v211
        %v263 = vunpack.c.l.bf16 %v212
        %v264 = vunpack.c.h.bf16 %v212
        %v265 = vunpack.c.l.bf16 %v213
        %v266 = vunpack.c.h.bf16 %v213
        %v267 = vunpack.c.l.bf16 %v214
        %v268 = vunpack.c.h.bf16 %v214
        %v269 = vunpack.c.l.bf16 %v215
        %v270 = vunpack.c.h.bf16 %v215
        %v271 = vunpack.c.l.bf16 %v216
        %v272 = vunpack.c.h.bf16 %v216
        %v273 = vunpack.c.l.bf16 %v217
        %v274 = vunpack.c.h.bf16 %v217
        %v275 = vunpack.c.l.bf16 %v218
        %v276 = vunpack.c.h.bf16 %v218
        %v277 = vunpack.c.l.bf16 %v219
        %v278 = vunpack.c.h.bf16 %v219
        %v279 = vunpack.c.l.bf16 %v220
        %v280 = vunpack.c.h.bf16 %v220
        %v281 = vunpack.c.l.bf16 %v221
        %v282 = vunpack.c.h.bf16 %v221
        %v283 = vunpack.c.l.bf16 %v222
        %v284 = vunpack.c.h.bf16 %v222
        %v285 = vunpack.c.l.bf16 %v223
        %v286 = vunpack.c.h.bf16 %v223
        %v287 = vunpack.c.l.bf16 %v224
        %v288 = vunpack.c.h.bf16 %v224
        %s289 = smul.u32 %s20, 128
        %s290 = sld [smem:[#allocation4 + %s289]]
        %v291 = vstv %s290
        %v292 = vmul.f32 %v225, %v291
        %v293 = vmul.f32 %v226, %v291
        %v294 = vmul.f32 %v227, %v291
        %v295 = vmul.f32 %v228, %v291
        %v296 = vmul.f32 %v229, %v291
        %v297 = vmul.f32 %v230, %v291
        %v298 = vmul.f32 %v231, %v291
        %v299 = vmul.f32 %v232, %v291
        %v300 = vmul.f32 %v233, %v291
        %v301 = vmul.f32 %v234, %v291
        %v302 = vmul.f32 %v235, %v291
        %v303 = vmul.f32 %v236, %v291
        %v304 = vmul.f32 %v237, %v291
        %v305 = vmul.f32 %v238, %v291
        %v306 = vmul.f32 %v239, %v291
        %v307 = vmul.f32 %v240, %v291
        %v308 = vmul.f32 %v241, %v291
        %v309 = vmul.f32 %v242, %v291
        %v310 = vmul.f32 %v243, %v291
        %v311 = vmul.f32 %v244, %v291
        %v312 = vmul.f32 %v245, %v291
        %v313 = vmul.f32 %v246, %v291
        %v314 = vmul.f32 %v247, %v291
        %v315 = vmul.f32 %v248, %v291
        %v316 = vmul.f32 %v249, %v291
        %v317 = vmul.f32 %v250, %v291
        %v318 = vmul.f32 %v251, %v291
        %v319 = vmul.f32 %v252, %v291
        %v320 = vmul.f32 %v253, %v291
        %v321 = vmul.f32 %v254, %v291
        %v322 = vmul.f32 %v255, %v291
        %v323 = vmul.f32 %v256, %v291
        %v324 = vmul.f32 %v257, %v291
        %v325 = vmul.f32 %v258, %v291
        %v326 = vmul.f32 %v259, %v291
        %v327 = vmul.f32 %v260, %v291
        %v328 = vmul.f32 %v261, %v291
        %v329 = vmul.f32 %v262, %v291
        %v330 = vmul.f32 %v263, %v291
        %v331 = vmul.f32 %v264, %v291
        %v332 = vmul.f32 %v265, %v291
        %v333 = vmul.f32 %v266, %v291
        %v334 = vmul.f32 %v267, %v291
        %v335 = vmul.f32 %v268, %v291
        %v336 = vmul.f32 %v269, %v291
        %v337 = vmul.f32 %v270, %v291
        %v338 = vmul.f32 %v271, %v291
        %v339 = vmul.f32 %v272, %v291
        %v340 = vmul.f32 %v273, %v291
        %v341 = vmul.f32 %v274, %v291
        %v342 = vmul.f32 %v275, %v291
        %v343 = vmul.f32 %v276, %v291
        %v344 = vmul.f32 %v277, %v291
        %v345 = vmul.f32 %v278, %v291
        %v346 = vmul.f32 %v279, %v291
        %v347 = vmul.f32 %v280, %v291
        %v348 = vmul.f32 %v281, %v291
        %v349 = vmul.f32 %v282, %v291
        %v350 = vmul.f32 %v283, %v291
        %v351 = vmul.f32 %v284, %v291
        %v352 = vmul.f32 %v285, %v291
        %v353 = vmul.f32 %v286, %v291
        %v354 = vmul.f32 %v287, %v291
        %v355 = vmul.f32 %v288, %v291
        %s356 = scalar_lea.vmem [#allocation10], 256
        %v357 = vld [vmem:[%s356] sm:$0xff]
        %v358 = vld [vmem:[%s356 + $0x8] sm:$0xff]
        %v359 = vld [vmem:[%s356 + $0x10] sm:$0xff]
        %v360 = vld [vmem:[%s356 + $0x18] sm:$0xff]
        %v361 = vld [vmem:[%s356 + $0x20] sm:$0xff]
        %v362 = vld [vmem:[%s356 + $0x28] sm:$0xff]
        %v363 = vld [vmem:[%s356 + $0x30] sm:$0xff]
        %v364 = vld [vmem:[%s356 + $0x38] sm:$0xff]
        %v365 = vld [vmem:[%s356 + $0x40] sm:$0xff]
        %v366 = vld [vmem:[%s356 + $0x48] sm:$0xff]
        %v367 = vld [vmem:[%s356 + $0x50] sm:$0xff]
        %v368 = vld [vmem:[%s356 + $0x58] sm:$0xff]
        %v369 = vld [vmem:[%s356 + $0x60] sm:$0xff]
        %v370 = vld [vmem:[%s356 + $0x68] sm:$0xff]
        %v371 = vld [vmem:[%s356 + $0x70] sm:$0xff]
        %v372 = vld [vmem:[%s356 + $0x78] sm:$0xff]
        %v373 = vld [vmem:[%s356 + $0x80] sm:$0xff]
        %v374 = vld [vmem:[%s356 + $0x88] sm:$0xff]
        %v375 = vld [vmem:[%s356 + $0x90] sm:$0xff]
        %v376 = vld [vmem:[%s356 + $0x98] sm:$0xff]
        %v377 = vld [vmem:[%s356 + $0xa0] sm:$0xff]
        %v378 = vld [vmem:[%s356 + $0xa8] sm:$0xff]
        %v379 = vld [vmem:[%s356 + $0xb0] sm:$0xff]
        %v380 = vld [vmem:[%s356 + $0xb8] sm:$0xff]
        %v381 = vld [vmem:[%s356 + $0xc0] sm:$0xff]
        %v382 = vld [vmem:[%s356 + $0xc8] sm:$0xff]
        %v383 = vld [vmem:[%s356 + $0xd0] sm:$0xff]
        %v384 = vld [vmem:[%s356 + $0xd8] sm:$0xff]
        %v385 = vld [vmem:[%s356 + $0xe0] sm:$0xff]
        %v386 = vld [vmem:[%s356 + $0xe8] sm:$0xff]
        %v387 = vld [vmem:[%s356 + $0xf0] sm:$0xff]
        %v388 = vld [vmem:[%s356 + $0xf8] sm:$0xff]
        %v389 = vunpack.c.l.bf16 %v357
        %v390 = vunpack.c.h.bf16 %v357
        %v391 = vunpack.c.l.bf16 %v358
        %v392 = vunpack.c.h.bf16 %v358
        %v393 = vunpack.c.l.bf16 %v359
        %v394 = vunpack.c.h.bf16 %v359
        %v395 = vunpack.c.l.bf16 %v360
        %v396 = vunpack.c.h.bf16 %v360
        %v397 = vunpack.c.l.bf16 %v361
        %v398 = vunpack.c.h.bf16 %v361
        %v399 = vunpack.c.l.bf16 %v362
        %v400 = vunpack.c.h.bf16 %v362
        %v401 = vunpack.c.l.bf16 %v363
        %v402 = vunpack.c.h.bf16 %v363
        %v403 = vunpack.c.l.bf16 %v364
        %v404 = vunpack.c.h.bf16 %v364
        %v405 = vunpack.c.l.bf16 %v365
        %v406 = vunpack.c.h.bf16 %v365
        %v407 = vunpack.c.l.bf16 %v366
        %v408 = vunpack.c.h.bf16 %v366
        %v409 = vunpack.c.l.bf16 %v367
        %v410 = vunpack.c.h.bf16 %v367
        %v411 = vunpack.c.l.bf16 %v368
        %v412 = vunpack.c.h.bf16 %v368
        %v413 = vunpack.c.l.bf16 %v369
        %v414 = vunpack.c.h.bf16 %v369
        %v415 = vunpack.c.l.bf16 %v370
        %v416 = vunpack.c.h.bf16 %v370
        %v417 = vunpack.c.l.bf16 %v371
        %v418 = vunpack.c.h.bf16 %v371
        %v419 = vunpack.c.l.bf16 %v372
        %v420 = vunpack.c.h.bf16 %v372
        %v421 = vunpack.c.l.bf16 %v373
        %v422 = vunpack.c.h.bf16 %v373
        %v423 = vunpack.c.l.bf16 %v374
        %v424 = vunpack.c.h.bf16 %v374
        %v425 = vunpack.c.l.bf16 %v375
        %v426 = vunpack.c.h.bf16 %v375
        %v427 = vunpack.c.l.bf16 %v376
        %v428 = vunpack.c.h.bf16 %v376
        %v429 = vunpack.c.l.bf16 %v377
        %v430 = vunpack.c.h.bf16 %v377
        %v431 = vunpack.c.l.bf16 %v378
        %v432 = vunpack.c.h.bf16 %v378
        %v433 = vunpack.c.l.bf16 %v379
        %v434 = vunpack.c.h.bf16 %v379
        %v435 = vunpack.c.l.bf16 %v380
        %v436 = vunpack.c.h.bf16 %v380
        %v437 = vunpack.c.l.bf16 %v381
        %v438 = vunpack.c.h.bf16 %v381
        %v439 = vunpack.c.l.bf16 %v382
        %v440 = vunpack.c.h.bf16 %v382
        %v441 = vunpack.c.l.bf16 %v383
        %v442 = vunpack.c.h.bf16 %v383
        %v443 = vunpack.c.l.bf16 %v384
        %v444 = vunpack.c.h.bf16 %v384
        %v445 = vunpack.c.l.bf16 %v385
        %v446 = vunpack.c.h.bf16 %v385
        %v447 = vunpack.c.l.bf16 %v386
        %v448 = vunpack.c.h.bf16 %v386
        %v449 = vunpack.c.l.bf16 %v387
        %v450 = vunpack.c.h.bf16 %v387
        %v451 = vunpack.c.l.bf16 %v388
        %v452 = vunpack.c.h.bf16 %v388
        %s453 = sadd.s32 %s289, 1
        %s454 = sld [smem:[#allocation4 + %s453]]
        %v455 = vstv %s454
        %v456 = vmul.f32 %v389, %v455
        %v457 = vmul.f32 %v390, %v455
        %v458 = vmul.f32 %v391, %v455
        %v459 = vmul.f32 %v392, %v455
        %v460 = vmul.f32 %v393, %v455
        %v461 = vmul.f32 %v394, %v455
        %v462 = vmul.f32 %v395, %v455
        %v463 = vmul.f32 %v396, %v455
        %v464 = vmul.f32 %v397, %v455
        %v465 = vmul.f32 %v398, %v455
        %v466 = vmul.f32 %v399, %v455
        %v467 = vmul.f32 %v400, %v455
        %v468 = vmul.f32 %v401, %v455
        %v469 = vmul.f32 %v402, %v455
        %v470 = vmul.f32 %v403, %v455
        %v471 = vmul.f32 %v404, %v455
        %v472 = vmul.f32 %v405, %v455
        %v473 = vmul.f32 %v406, %v455
        %v474 = vmul.f32 %v407, %v455
        %v475 = vmul.f32 %v408, %v455
        %v476 = vmul.f32 %v409, %v455
        %v477 = vmul.f32 %v410, %v455
        %v478 = vmul.f32 %v411, %v455
        %v479 = vmul.f32 %v412, %v455
        %v480 = vmul.f32 %v413, %v455
        %v481 = vmul.f32 %v414, %v455
        %v482 = vmul.f32 %v415, %v455
        %v483 = vmul.f32 %v416, %v455
        %v484 = vmul.f32 %v417, %v455
        %v485 = vmul.f32 %v418, %v455
        %v486 = vmul.f32 %v419, %v455
        %v487 = vmul.f32 %v420, %v455
        %v488 = vmul.f32 %v421, %v455
        %v489 = vmul.f32 %v422, %v455
        %v490 = vmul.f32 %v423, %v455
        %v491 = vmul.f32 %v424, %v455
        %v492 = vmul.f32 %v425, %v455
        %v493 = vmul.f32 %v426, %v455
        %v494 = vmul.f32 %v427, %v455
        %v495 = vmul.f32 %v428, %v455
        %v496 = vmul.f32 %v429, %v455
        %v497 = vmul.f32 %v430, %v455
        %v498 = vmul.f32 %v431, %v455
        %v499 = vmul.f32 %v432, %v455
        %v500 = vmul.f32 %v433, %v455
        %v501 = vmul.f32 %v434, %v455
        %v502 = vmul.f32 %v435, %v455
        %v503 = vmul.f32 %v436, %v455
        %v504 = vmul.f32 %v437, %v455
        %v505 = vmul.f32 %v438, %v455
        %v506 = vmul.f32 %v439, %v455
        %v507 = vmul.f32 %v440, %v455
        %v508 = vmul.f32 %v441, %v455
        %v509 = vmul.f32 %v442, %v455
        %v510 = vmul.f32 %v443, %v455
        %v511 = vmul.f32 %v444, %v455
        %v512 = vmul.f32 %v445, %v455
        %v513 = vmul.f32 %v446, %v455
        %v514 = vmul.f32 %v447, %v455
        %v515 = vmul.f32 %v448, %v455
        %v516 = vmul.f32 %v449, %v455
        %v517 = vmul.f32 %v450, %v455
        %v518 = vmul.f32 %v451, %v455
        %v519 = vmul.f32 %v452, %v455
        %v520 = vadd.f32 %v292, %v456
        %v521 = vadd.f32 %v293, %v457
        %v522 = vadd.f32 %v294, %v458
        %v523 = vadd.f32 %v295, %v459
        %v524 = vadd.f32 %v296, %v460
        %v525 = vadd.f32 %v297, %v461
        %v526 = vadd.f32 %v298, %v462
        %v527 = vadd.f32 %v299, %v463
        %v528 = vadd.f32 %v300, %v464
        %v529 = vadd.f32 %v301, %v465
        %v530 = vadd.f32 %v302, %v466
        %v531 = vadd.f32 %v303, %v467
        %v532 = vadd.f32 %v304, %v468
        %v533 = vadd.f32 %v305, %v469
        %v534 = vadd.f32 %v306, %v470
        %v535 = vadd.f32 %v307, %v471
        %v536 = vadd.f32 %v308, %v472
        %v537 = vadd.f32 %v309, %v473
        %v538 = vadd.f32 %v310, %v474
        %v539 = vadd.f32 %v311, %v475
        %v540 = vadd.f32 %v312, %v476
        %v541 = vadd.f32 %v313, %v477
        %v542 = vadd.f32 %v314, %v478
        %v543 = vadd.f32 %v315, %v479
        %v544 = vadd.f32 %v316, %v480
        %v545 = vadd.f32 %v317, %v481
        %v546 = vadd.f32 %v318, %v482
        %v547 = vadd.f32 %v319, %v483
        %v548 = vadd.f32 %v320, %v484
        %v549 = vadd.f32 %v321, %v485
        %v550 = vadd.f32 %v322, %v486
        %v551 = vadd.f32 %v323, %v487
        %v552 = vadd.f32 %v324, %v488
        %v553 = vadd.f32 %v325, %v489
        %v554 = vadd.f32 %v326, %v490
        %v555 = vadd.f32 %v327, %v491
        %v556 = vadd.f32 %v328, %v492
        %v557 = vadd.f32 %v329, %v493
        %v558 = vadd.f32 %v330, %v494
        %v559 = vadd.f32 %v331, %v495
        %v560 = vadd.f32 %v332, %v496
        %v561 = vadd.f32 %v333, %v497
        %v562 = vadd.f32 %v334, %v498
        %v563 = vadd.f32 %v335, %v499
        %v564 = vadd.f32 %v336, %v500
        %v565 = vadd.f32 %v337, %v501
        %v566 = vadd.f32 %v338, %v502
        %v567 = vadd.f32 %v339, %v503
        %v568 = vadd.f32 %v340, %v504
        %v569 = vadd.f32 %v341, %v505
        %v570 = vadd.f32 %v342, %v506
        %v571 = vadd.f32 %v343, %v507
        %v572 = vadd.f32 %v344, %v508
        %v573 = vadd.f32 %v345, %v509
        %v574 = vadd.f32 %v346, %v510
        %v575 = vadd.f32 %v347, %v511
        %v576 = vadd.f32 %v348, %v512
        %v577 = vadd.f32 %v349, %v513
        %v578 = vadd.f32 %v350, %v514
        %v579 = vadd.f32 %v351, %v515
        %v580 = vadd.f32 %v352, %v516
        %v581 = vadd.f32 %v353, %v517
        %v582 = vadd.f32 %v354, %v518
        %v583 = vadd.f32 %v355, %v519
        %s584 = scalar_lea.vmem [#allocation10], 512
        %v585 = vld [vmem:[%s584] sm:$0xff]
        %v586 = vld [vmem:[%s584 + $0x8] sm:$0xff]
        %v587 = vld [vmem:[%s584 + $0x10] sm:$0xff]
        %v588 = vld [vmem:[%s584 + $0x18] sm:$0xff]
        %v589 = vld [vmem:[%s584 + $0x20] sm:$0xff]
        %v590 = vld [vmem:[%s584 + $0x28] sm:$0xff]
        %v591 = vld [vmem:[%s584 + $0x30] sm:$0xff]
        %v592 = vld [vmem:[%s584 + $0x38] sm:$0xff]
        %v593 = vld [vmem:[%s584 + $0x40] sm:$0xff]
        %v594 = vld [vmem:[%s584 + $0x48] sm:$0xff]
        %v595 = vld [vmem:[%s584 + $0x50] sm:$0xff]
        %v596 = vld [vmem:[%s584 + $0x58] sm:$0xff]
        %v597 = vld [vmem:[%s584 + $0x60] sm:$0xff]
        %v598 = vld [vmem:[%s584 + $0x68] sm:$0xff]
        %v599 = vld [vmem:[%s584 + $0x70] sm:$0xff]
        %v600 = vld [vmem:[%s584 + $0x78] sm:$0xff]
        %v601 = vld [vmem:[%s584 + $0x80] sm:$0xff]
        %v602 = vld [vmem:[%s584 + $0x88] sm:$0xff]
        %v603 = vld [vmem:[%s584 + $0x90] sm:$0xff]
        %v604 = vld [vmem:[%s584 + $0x98] sm:$0xff]
        %v605 = vld [vmem:[%s584 + $0xa0] sm:$0xff]
        %v606 = vld [vmem:[%s584 + $0xa8] sm:$0xff]
        %v607 = vld [vmem:[%s584 + $0xb0] sm:$0xff]
        %v608 = vld [vmem:[%s584 + $0xb8] sm:$0xff]
        %v609 = vld [vmem:[%s584 + $0xc0] sm:$0xff]
        %v610 = vld [vmem:[%s584 + $0xc8] sm:$0xff]
        %v611 = vld [vmem:[%s584 + $0xd0] sm:$0xff]
        %v612 = vld [vmem:[%s584 + $0xd8] sm:$0xff]
        %v613 = vld [vmem:[%s584 + $0xe0] sm:$0xff]
        %v614 = vld [vmem:[%s584 + $0xe8] sm:$0xff]
        %v615 = vld [vmem:[%s584 + $0xf0] sm:$0xff]
        %v616 = vld [vmem:[%s584 + $0xf8] sm:$0xff]
        %v617 = vunpack.c.l.bf16 %v585
        %v618 = vunpack.c.h.bf16 %v585
        %v619 = vunpack.c.l.bf16 %v586
        %v620 = vunpack.c.h.bf16 %v586
        %v621 = vunpack.c.l.bf16 %v587
        %v622 = vunpack.c.h.bf16 %v587
        %v623 = vunpack.c.l.bf16 %v588
        %v624 = vunpack.c.h.bf16 %v588
        %v625 = vunpack.c.l.bf16 %v589
        %v626 = vunpack.c.h.bf16 %v589
        %v627 = vunpack.c.l.bf16 %v590
        %v628 = vunpack.c.h.bf16 %v590
        %v629 = vunpack.c.l.bf16 %v591
        %v630 = vunpack.c.h.bf16 %v591
        %v631 = vunpack.c.l.bf16 %v592
        %v632 = vunpack.c.h.bf16 %v592
        %v633 = vunpack.c.l.bf16 %v593
        %v634 = vunpack.c.h.bf16 %v593
        %v635 = vunpack.c.l.bf16 %v594
        %v636 = vunpack.c.h.bf16 %v594
        %v637 = vunpack.c.l.bf16 %v595
        %v638 = vunpack.c.h.bf16 %v595
        %v639 = vunpack.c.l.bf16 %v596
        %v640 = vunpack.c.h.bf16 %v596
        %v641 = vunpack.c.l.bf16 %v597
        %v642 = vunpack.c.h.bf16 %v597
        %v643 = vunpack.c.l.bf16 %v598
        %v644 = vunpack.c.h.bf16 %v598
        %v645 = vunpack.c.l.bf16 %v599
        %v646 = vunpack.c.h.bf16 %v599
        %v647 = vunpack.c.l.bf16 %v600
        %v648 = vunpack.c.h.bf16 %v600
        %v649 = vunpack.c.l.bf16 %v601
        %v650 = vunpack.c.h.bf16 %v601
        %v651 = vunpack.c.l.bf16 %v602
        %v652 = vunpack.c.h.bf16 %v602
        %v653 = vunpack.c.l.bf16 %v603
        %v654 = vunpack.c.h.bf16 %v603
        %v655 = vunpack.c.l.bf16 %v604
        %v656 = vunpack.c.h.bf16 %v604
        %v657 = vunpack.c.l.bf16 %v605
        %v658 = vunpack.c.h.bf16 %v605
        %v659 = vunpack.c.l.bf16 %v606
        %v660 = vunpack.c.h.bf16 %v606
        %v661 = vunpack.c.l.bf16 %v607
        %v662 = vunpack.c.h.bf16 %v607
        %v663 = vunpack.c.l.bf16 %v608
        %v664 = vunpack.c.h.bf16 %v608
        %v665 = vunpack.c.l.bf16 %v609
        %v666 = vunpack.c.h.bf16 %v609
        %v667 = vunpack.c.l.bf16 %v610
        %v668 = vunpack.c.h.bf16 %v610
        %v669 = vunpack.c.l.bf16 %v611
        %v670 = vunpack.c.h.bf16 %v611
        %v671 = vunpack.c.l.bf16 %v612
        %v672 = vunpack.c.h.bf16 %v612
        %v673 = vunpack.c.l.bf16 %v613
        %v674 = vunpack.c.h.bf16 %v613
        %v675 = vunpack.c.l.bf16 %v614
        %v676 = vunpack.c.h.bf16 %v614
        %v677 = vunpack.c.l.bf16 %v615
        %v678 = vunpack.c.h.bf16 %v615
        %v679 = vunpack.c.l.bf16 %v616
        %v680 = vunpack.c.h.bf16 %v616
        %s681 = sadd.s32 %s289, 2
        %s682 = sld [smem:[#allocation4 + %s681]]
        %v683 = vstv %s682
        %v684 = vmul.f32 %v617, %v683
        %v685 = vmul.f32 %v618, %v683
        %v686 = vmul.f32 %v619, %v683
        %v687 = vmul.f32 %v620, %v683
        %v688 = vmul.f32 %v621, %v683
        %v689 = vmul.f32 %v622, %v683
        %v690 = vmul.f32 %v623, %v683
        %v691 = vmul.f32 %v624, %v683
        %v692 = vmul.f32 %v625, %v683
        %v693 = vmul.f32 %v626, %v683
        %v694 = vmul.f32 %v627, %v683
        %v695 = vmul.f32 %v628, %v683
        %v696 = vmul.f32 %v629, %v683
        %v697 = vmul.f32 %v630, %v683
        %v698 = vmul.f32 %v631, %v683
        %v699 = vmul.f32 %v632, %v683
        %v700 = vmul.f32 %v633, %v683
        %v701 = vmul.f32 %v634, %v683
        %v702 = vmul.f32 %v635, %v683
        %v703 = vmul.f32 %v636, %v683
        %v704 = vmul.f32 %v637, %v683
        %v705 = vmul.f32 %v638, %v683
        %v706 = vmul.f32 %v639, %v683
        %v707 = vmul.f32 %v640, %v683
        %v708 = vmul.f32 %v641, %v683
        %v709 = vmul.f32 %v642, %v683
        %v710 = vmul.f32 %v643, %v683
        %v711 = vmul.f32 %v644, %v683
        %v712 = vmul.f32 %v645, %v683
        %v713 = vmul.f32 %v646, %v683
        %v714 = vmul.f32 %v647, %v683
        %v715 = vmul.f32 %v648, %v683
        %v716 = vmul.f32 %v649, %v683
        %v717 = vmul.f32 %v650, %v683
        %v718 = vmul.f32 %v651, %v683
        %v719 = vmul.f32 %v652, %v683
        %v720 = vmul.f32 %v653, %v683
        %v721 = vmul.f32 %v654, %v683
        %v722 = vmul.f32 %v655, %v683
        %v723 = vmul.f32 %v656, %v683
        %v724 = vmul.f32 %v657, %v683
        %v725 = vmul.f32 %v658, %v683
        %v726 = vmul.f32 %v659, %v683
        %v727 = vmul.f32 %v660, %v683
        %v728 = vmul.f32 %v661, %v683
        %v729 = vmul.f32 %v662, %v683
        %v730 = vmul.f32 %v663, %v683
        %v731 = vmul.f32 %v664, %v683
        %v732 = vmul.f32 %v665, %v683
        %v733 = vmul.f32 %v666, %v683
        %v734 = vmul.f32 %v667, %v683
        %v735 = vmul.f32 %v668, %v683
        %v736 = vmul.f32 %v669, %v683
        %v737 = vmul.f32 %v670, %v683
        %v738 = vmul.f32 %v671, %v683
        %v739 = vmul.f32 %v672, %v683
        %v740 = vmul.f32 %v673, %v683
        %v741 = vmul.f32 %v674, %v683
        %v742 = vmul.f32 %v675, %v683
        %v743 = vmul.f32 %v676, %v683
        %v744 = vmul.f32 %v677, %v683
        %v745 = vmul.f32 %v678, %v683
        %v746 = vmul.f32 %v679, %v683
        %v747 = vmul.f32 %v680, %v683
        %v748 = vadd.f32 %v520, %v684
        %v749 = vadd.f32 %v521, %v685
        %v750 = vadd.f32 %v522, %v686
        %v751 = vadd.f32 %v523, %v687
        %v752 = vadd.f32 %v524, %v688
        %v753 = vadd.f32 %v525, %v689
        %v754 = vadd.f32 %v526, %v690
        %v755 = vadd.f32 %v527, %v691
        %v756 = vadd.f32 %v528, %v692
        %v757 = vadd.f32 %v529, %v693
        %v758 = vadd.f32 %v530, %v694
        %v759 = vadd.f32 %v531, %v695
        %v760 = vadd.f32 %v532, %v696
        %v761 = vadd.f32 %v533, %v697
        %v762 = vadd.f32 %v534, %v698
        %v763 = vadd.f32 %v535, %v699
        %v764 = vadd.f32 %v536, %v700
        %v765 = vadd.f32 %v537, %v701
        %v766 = vadd.f32 %v538, %v702
        %v767 = vadd.f32 %v539, %v703
        %v768 = vadd.f32 %v540, %v704
        %v769 = vadd.f32 %v541, %v705
        %v770 = vadd.f32 %v542, %v706
        %v771 = vadd.f32 %v543, %v707
        %v772 = vadd.f32 %v544, %v708
        %v773 = vadd.f32 %v545, %v709
        %v774 = vadd.f32 %v546, %v710
        %v775 = vadd.f32 %v547, %v711
        %v776 = vadd.f32 %v548, %v712
        %v777 = vadd.f32 %v549, %v713
        %v778 = vadd.f32 %v550, %v714
        %v779 = vadd.f32 %v551, %v715
        %v780 = vadd.f32 %v552, %v716
        %v781 = vadd.f32 %v553, %v717
        %v782 = vadd.f32 %v554, %v718
        %v783 = vadd.f32 %v555, %v719
        %v784 = vadd.f32 %v556, %v720
        %v785 = vadd.f32 %v557, %v721
        %v786 = vadd.f32 %v558, %v722
        %v787 = vadd.f32 %v559, %v723
        %v788 = vadd.f32 %v560, %v724
        %v789 = vadd.f32 %v561, %v725
        %v790 = vadd.f32 %v562, %v726
        %v791 = vadd.f32 %v563, %v727
        %v792 = vadd.f32 %v564, %v728
        %v793 = vadd.f32 %v565, %v729
        %v794 = vadd.f32 %v566, %v730
        %v795 = vadd.f32 %v567, %v731
        %v796 = vadd.f32 %v568, %v732
        %v797 = vadd.f32 %v569, %v733
        %v798 = vadd.f32 %v570, %v734
        %v799 = vadd.f32 %v571, %v735
        %v800 = vadd.f32 %v572, %v736
        %v801 = vadd.f32 %v573, %v737
        %v802 = vadd.f32 %v574, %v738
        %v803 = vadd.f32 %v575, %v739
        %v804 = vadd.f32 %v576, %v740
        %v805 = vadd.f32 %v577, %v741
        %v806 = vadd.f32 %v578, %v742
        %v807 = vadd.f32 %v579, %v743
        %v808 = vadd.f32 %v580, %v744
        %v809 = vadd.f32 %v581, %v745
        %v810 = vadd.f32 %v582, %v746
        %v811 = vadd.f32 %v583, %v747
        %s812 = scalar_lea.vmem [#allocation10], 768
        %v813 = vld [vmem:[%s812] sm:$0xff]
        %v814 = vld [vmem:[%s812 + $0x8] sm:$0xff]
        %v815 = vld [vmem:[%s812 + $0x10] sm:$0xff]
        %v816 = vld [vmem:[%s812 + $0x18] sm:$0xff]
        %v817 = vld [vmem:[%s812 + $0x20] sm:$0xff]
        %v818 = vld [vmem:[%s812 + $0x28] sm:$0xff]
        %v819 = vld [vmem:[%s812 + $0x30] sm:$0xff]
        %v820 = vld [vmem:[%s812 + $0x38] sm:$0xff]
        %v821 = vld [vmem:[%s812 + $0x40] sm:$0xff]
        %v822 = vld [vmem:[%s812 + $0x48] sm:$0xff]
        %v823 = vld [vmem:[%s812 + $0x50] sm:$0xff]
        %v824 = vld [vmem:[%s812 + $0x58] sm:$0xff]
        %v825 = vld [vmem:[%s812 + $0x60] sm:$0xff]
        %v826 = vld [vmem:[%s812 + $0x68] sm:$0xff]
        %v827 = vld [vmem:[%s812 + $0x70] sm:$0xff]
        %v828 = vld [vmem:[%s812 + $0x78] sm:$0xff]
        %v829 = vld [vmem:[%s812 + $0x80] sm:$0xff]
        %v830 = vld [vmem:[%s812 + $0x88] sm:$0xff]
        %v831 = vld [vmem:[%s812 + $0x90] sm:$0xff]
        %v832 = vld [vmem:[%s812 + $0x98] sm:$0xff]
        %v833 = vld [vmem:[%s812 + $0xa0] sm:$0xff]
        %v834 = vld [vmem:[%s812 + $0xa8] sm:$0xff]
        %v835 = vld [vmem:[%s812 + $0xb0] sm:$0xff]
        %v836 = vld [vmem:[%s812 + $0xb8] sm:$0xff]
        %v837 = vld [vmem:[%s812 + $0xc0] sm:$0xff]
        %v838 = vld [vmem:[%s812 + $0xc8] sm:$0xff]
        %v839 = vld [vmem:[%s812 + $0xd0] sm:$0xff]
        %v840 = vld [vmem:[%s812 + $0xd8] sm:$0xff]
        %v841 = vld [vmem:[%s812 + $0xe0] sm:$0xff]
        %v842 = vld [vmem:[%s812 + $0xe8] sm:$0xff]
        %v843 = vld [vmem:[%s812 + $0xf0] sm:$0xff]
        %v844 = vld [vmem:[%s812 + $0xf8] sm:$0xff]
        %v845 = vunpack.c.l.bf16 %v813
        %v846 = vunpack.c.h.bf16 %v813
        %v847 = vunpack.c.l.bf16 %v814
        %v848 = vunpack.c.h.bf16 %v814
        %v849 = vunpack.c.l.bf16 %v815
        %v850 = vunpack.c.h.bf16 %v815
        %v851 = vunpack.c.l.bf16 %v816
        %v852 = vunpack.c.h.bf16 %v816
        %v853 = vunpack.c.l.bf16 %v817
        %v854 = vunpack.c.h.bf16 %v817
        %v855 = vunpack.c.l.bf16 %v818
        %v856 = vunpack.c.h.bf16 %v818
        %v857 = vunpack.c.l.bf16 %v819
        %v858 = vunpack.c.h.bf16 %v819
        %v859 = vunpack.c.l.bf16 %v820
        %v860 = vunpack.c.h.bf16 %v820
        %v861 = vunpack.c.l.bf16 %v821
        %v862 = vunpack.c.h.bf16 %v821
        %v863 = vunpack.c.l.bf16 %v822
        %v864 = vunpack.c.h.bf16 %v822
        %v865 = vunpack.c.l.bf16 %v823
        %v866 = vunpack.c.h.bf16 %v823
        %v867 = vunpack.c.l.bf16 %v824
        %v868 = vunpack.c.h.bf16 %v824
        %v869 = vunpack.c.l.bf16 %v825
        %v870 = vunpack.c.h.bf16 %v825
        %v871 = vunpack.c.l.bf16 %v826
        %v872 = vunpack.c.h.bf16 %v826
        %v873 = vunpack.c.l.bf16 %v827
        %v874 = vunpack.c.h.bf16 %v827
        %v875 = vunpack.c.l.bf16 %v828
        %v876 = vunpack.c.h.bf16 %v828
        %v877 = vunpack.c.l.bf16 %v829
        %v878 = vunpack.c.h.bf16 %v829
        %v879 = vunpack.c.l.bf16 %v830
        %v880 = vunpack.c.h.bf16 %v830
        %v881 = vunpack.c.l.bf16 %v831
        %v882 = vunpack.c.h.bf16 %v831
        %v883 = vunpack.c.l.bf16 %v832
        %v884 = vunpack.c.h.bf16 %v832
        %v885 = vunpack.c.l.bf16 %v833
        %v886 = vunpack.c.h.bf16 %v833
        %v887 = vunpack.c.l.bf16 %v834
        %v888 = vunpack.c.h.bf16 %v834
        %v889 = vunpack.c.l.bf16 %v835
        %v890 = vunpack.c.h.bf16 %v835
        %v891 = vunpack.c.l.bf16 %v836
        %v892 = vunpack.c.h.bf16 %v836
        %v893 = vunpack.c.l.bf16 %v837
        %v894 = vunpack.c.h.bf16 %v837
        %v895 = vunpack.c.l.bf16 %v838
        %v896 = vunpack.c.h.bf16 %v838
        %v897 = vunpack.c.l.bf16 %v839
        %v898 = vunpack.c.h.bf16 %v839
        %v899 = vunpack.c.l.bf16 %v840
        %v900 = vunpack.c.h.bf16 %v840
        %v901 = vunpack.c.l.bf16 %v841
        %v902 = vunpack.c.h.bf16 %v841
        %v903 = vunpack.c.l.bf16 %v842
        %v904 = vunpack.c.h.bf16 %v842
        %v905 = vunpack.c.l.bf16 %v843
        %v906 = vunpack.c.h.bf16 %v843
        %v907 = vunpack.c.l.bf16 %v844
        %v908 = vunpack.c.h.bf16 %v844
        %s909 = sadd.s32 %s289, 3
        %s910 = sld [smem:[#allocation4 + %s909]]
        %v911 = vstv %s910
        %v912 = vmul.f32 %v845, %v911
        %v913 = vmul.f32 %v846, %v911
        %v914 = vmul.f32 %v847, %v911
        %v915 = vmul.f32 %v848, %v911
        %v916 = vmul.f32 %v849, %v911
        %v917 = vmul.f32 %v850, %v911
        %v918 = vmul.f32 %v851, %v911
        %v919 = vmul.f32 %v852, %v911
        %v920 = vmul.f32 %v853, %v911
        %v921 = vmul.f32 %v854, %v911
        %v922 = vmul.f32 %v855, %v911
        %v923 = vmul.f32 %v856, %v911
        %v924 = vmul.f32 %v857, %v911
        %v925 = vmul.f32 %v858, %v911
        %v926 = vmul.f32 %v859, %v911
        %v927 = vmul.f32 %v860, %v911
        %v928 = vmul.f32 %v861, %v911
        %v929 = vmul.f32 %v862, %v911
        %v930 = vmul.f32 %v863, %v911
        %v931 = vmul.f32 %v864, %v911
        %v932 = vmul.f32 %v865, %v911
        %v933 = vmul.f32 %v866, %v911
        %v934 = vmul.f32 %v867, %v911
        %v935 = vmul.f32 %v868, %v911
        %v936 = vmul.f32 %v869, %v911
        %v937 = vmul.f32 %v870, %v911
        %v938 = vmul.f32 %v871, %v911
        %v939 = vmul.f32 %v872, %v911
        %v940 = vmul.f32 %v873, %v911
        %v941 = vmul.f32 %v874, %v911
        %v942 = vmul.f32 %v875, %v911
        %v943 = vmul.f32 %v876, %v911
        %v944 = vmul.f32 %v877, %v911
        %v945 = vmul.f32 %v878, %v911
        %v946 = vmul.f32 %v879, %v911
        %v947 = vmul.f32 %v880, %v911
        %v948 = vmul.f32 %v881, %v911
        %v949 = vmul.f32 %v882, %v911
        %v950 = vmul.f32 %v883, %v911
        %v951 = vmul.f32 %v884, %v911
        %v952 = vmul.f32 %v885, %v911
        %v953 = vmul.f32 %v886, %v911
        %v954 = vmul.f32 %v887, %v911
        %v955 = vmul.f32 %v888, %v911
        %v956 = vmul.f32 %v889, %v911
        %v957 = vmul.f32 %v890, %v911
        %v958 = vmul.f32 %v891, %v911
        %v959 = vmul.f32 %v892, %v911
        %v960 = vmul.f32 %v893, %v911
        %v961 = vmul.f32 %v894, %v911
        %v962 = vmul.f32 %v895, %v911
        %v963 = vmul.f32 %v896, %v911
        %v964 = vmul.f32 %v897, %v911
        %v965 = vmul.f32 %v898, %v911
        %v966 = vmul.f32 %v899, %v911
        %v967 = vmul.f32 %v900, %v911
        %v968 = vmul.f32 %v901, %v911
        %v969 = vmul.f32 %v902, %v911
        %v970 = vmul.f32 %v903, %v911
        %v971 = vmul.f32 %v904, %v911
        %v972 = vmul.f32 %v905, %v911
        %v973 = vmul.f32 %v906, %v911
        %v974 = vmul.f32 %v907, %v911
        %v975 = vmul.f32 %v908, %v911
        %v976 = vadd.f32 %v748, %v912
        %v977 = vadd.f32 %v749, %v913
        %v978 = vadd.f32 %v750, %v914
        %v979 = vadd.f32 %v751, %v915
        %v980 = vadd.f32 %v752, %v916
        %v981 = vadd.f32 %v753, %v917
        %v982 = vadd.f32 %v754, %v918
        %v983 = vadd.f32 %v755, %v919
        %v984 = vadd.f32 %v756, %v920
        %v985 = vadd.f32 %v757, %v921
        %v986 = vadd.f32 %v758, %v922
        %v987 = vadd.f32 %v759, %v923
        %v988 = vadd.f32 %v760, %v924
        %v989 = vadd.f32 %v761, %v925
        %v990 = vadd.f32 %v762, %v926
        %v991 = vadd.f32 %v763, %v927
        %v992 = vadd.f32 %v764, %v928
        %v993 = vadd.f32 %v765, %v929
        %v994 = vadd.f32 %v766, %v930
        %v995 = vadd.f32 %v767, %v931
        %v996 = vadd.f32 %v768, %v932
        %v997 = vadd.f32 %v769, %v933
        %v998 = vadd.f32 %v770, %v934
        %v999 = vadd.f32 %v771, %v935
        %v1000 = vadd.f32 %v772, %v936
        %v1001 = vadd.f32 %v773, %v937
        %v1002 = vadd.f32 %v774, %v938
        %v1003 = vadd.f32 %v775, %v939
        %v1004 = vadd.f32 %v776, %v940
        %v1005 = vadd.f32 %v777, %v941
        %v1006 = vadd.f32 %v778, %v942
        %v1007 = vadd.f32 %v779, %v943
        %v1008 = vadd.f32 %v780, %v944
        %v1009 = vadd.f32 %v781, %v945
        %v1010 = vadd.f32 %v782, %v946
        %v1011 = vadd.f32 %v783, %v947
        %v1012 = vadd.f32 %v784, %v948
        %v1013 = vadd.f32 %v785, %v949
        %v1014 = vadd.f32 %v786, %v950
        %v1015 = vadd.f32 %v787, %v951
        %v1016 = vadd.f32 %v788, %v952
        %v1017 = vadd.f32 %v789, %v953
        %v1018 = vadd.f32 %v790, %v954
        %v1019 = vadd.f32 %v791, %v955
        %v1020 = vadd.f32 %v792, %v956
        %v1021 = vadd.f32 %v793, %v957
        %v1022 = vadd.f32 %v794, %v958
        %v1023 = vadd.f32 %v795, %v959
        %v1024 = vadd.f32 %v796, %v960
        %v1025 = vadd.f32 %v797, %v961
        %v1026 = vadd.f32 %v798, %v962
        %v1027 = vadd.f32 %v799, %v963
        %v1028 = vadd.f32 %v800, %v964
        %v1029 = vadd.f32 %v801, %v965
        %v1030 = vadd.f32 %v802, %v966
        %v1031 = vadd.f32 %v803, %v967
        %v1032 = vadd.f32 %v804, %v968
        %v1033 = vadd.f32 %v805, %v969
        %v1034 = vadd.f32 %v806, %v970
        %v1035 = vadd.f32 %v807, %v971
        %v1036 = vadd.f32 %v808, %v972
        %v1037 = vadd.f32 %v809, %v973
        %v1038 = vadd.f32 %v810, %v974
        %v1039 = vadd.f32 %v811, %v975
        %v1040 = vpack.c.bf16 %v977, %v976
        %v1041 = vpack.c.bf16 %v979, %v978
        %v1042 = vpack.c.bf16 %v981, %v980
        %v1043 = vpack.c.bf16 %v983, %v982
        %v1044 = vpack.c.bf16 %v985, %v984
        %v1045 = vpack.c.bf16 %v987, %v986
        %v1046 = vpack.c.bf16 %v989, %v988
        %v1047 = vpack.c.bf16 %v991, %v990
        %v1048 = vpack.c.bf16 %v993, %v992
        %v1049 = vpack.c.bf16 %v995, %v994
        %v1050 = vpack.c.bf16 %v997, %v996
        %v1051 = vpack.c.bf16 %v999, %v998
        %v1052 = vpack.c.bf16 %v1001, %v1000
        %v1053 = vpack.c.bf16 %v1003, %v1002
        %v1054 = vpack.c.bf16 %v1005, %v1004
        %v1055 = vpack.c.bf16 %v1007, %v1006
        %v1056 = vpack.c.bf16 %v1009, %v1008
        %v1057 = vpack.c.bf16 %v1011, %v1010
        %v1058 = vpack.c.bf16 %v1013, %v1012
        %v1059 = vpack.c.bf16 %v1015, %v1014
        %v1060 = vpack.c.bf16 %v1017, %v1016
        %v1061 = vpack.c.bf16 %v1019, %v1018
        %v1062 = vpack.c.bf16 %v1021, %v1020
        %v1063 = vpack.c.bf16 %v1023, %v1022
        %v1064 = vpack.c.bf16 %v1025, %v1024
        %v1065 = vpack.c.bf16 %v1027, %v1026
        %v1066 = vpack.c.bf16 %v1029, %v1028
        %v1067 = vpack.c.bf16 %v1031, %v1030
        %v1068 = vpack.c.bf16 %v1033, %v1032
        %v1069 = vpack.c.bf16 %v1035, %v1034
        %v1070 = vpack.c.bf16 %v1037, %v1036
        %v1071 = vpack.c.bf16 %v1039, %v1038
        %1072 = vst [vmem:[#allocation2] sm:$0xff] %v1040
        %1073 = vst [vmem:[#allocation2 + $0x8] sm:$0xff] %v1041
        %1074 = vst [vmem:[#allocation2 + $0x10] sm:$0xff] %v1042
        %1075 = vst [vmem:[#allocation2 + $0x18] sm:$0xff] %v1043
        %1076 = vst [vmem:[#allocation2 + $0x20] sm:$0xff] %v1044
        %1077 = vst [vmem:[#allocation2 + $0x28] sm:$0xff] %v1045
        %1078 = vst [vmem:[#allocation2 + $0x30] sm:$0xff] %v1046
        %1079 = vst [vmem:[#allocation2 + $0x38] sm:$0xff] %v1047
        %1080 = vst [vmem:[#allocation2 + $0x40] sm:$0xff] %v1048
        %1081 = vst [vmem:[#allocation2 + $0x48] sm:$0xff] %v1049
        %1082 = vst [vmem:[#allocation2 + $0x50] sm:$0xff] %v1050
        %1083 = vst [vmem:[#allocation2 + $0x58] sm:$0xff] %v1051
        %1084 = vst [vmem:[#allocation2 + $0x60] sm:$0xff] %v1052
        %1085 = vst [vmem:[#allocation2 + $0x68] sm:$0xff] %v1053
        %1086 = vst [vmem:[#allocation2 + $0x70] sm:$0xff] %v1054
        %1087 = vst [vmem:[#allocation2 + $0x78] sm:$0xff] %v1055
        %1088 = vst [vmem:[#allocation2 + $0x80] sm:$0xff] %v1056
        %1089 = vst [vmem:[#allocation2 + $0x88] sm:$0xff] %v1057
        %1090 = vst [vmem:[#allocation2 + $0x90] sm:$0xff] %v1058
        %1091 = vst [vmem:[#allocation2 + $0x98] sm:$0xff] %v1059
        %1092 = vst [vmem:[#allocation2 + $0xa0] sm:$0xff] %v1060
        %1093 = vst [vmem:[#allocation2 + $0xa8] sm:$0xff] %v1061
        %1094 = vst [vmem:[#allocation2 + $0xb0] sm:$0xff] %v1062
        %1095 = vst [vmem:[#allocation2 + $0xb8] sm:$0xff] %v1063
        %1096 = vst [vmem:[#allocation2 + $0xc0] sm:$0xff] %v1064
        %1097 = vst [vmem:[#allocation2 + $0xc8] sm:$0xff] %v1065
        %1098 = vst [vmem:[#allocation2 + $0xd0] sm:$0xff] %v1066
        %1099 = vst [vmem:[#allocation2 + $0xd8] sm:$0xff] %v1067
        %1100 = vst [vmem:[#allocation2 + $0xe0] sm:$0xff] %v1068
        %1101 = vst [vmem:[#allocation2 + $0xe8] sm:$0xff] %v1069
        %1102 = vst [vmem:[#allocation2 + $0xf0] sm:$0xff] %v1070
        %1103 = vst [vmem:[#allocation2 + $0xf8] sm:$0xff] %v1071
        %v1104 = vld [vmem:[#allocation10] sm:$0xff]
        %v1105 = vld [vmem:[#allocation10 + $0x8] sm:$0xff]
        %v1106 = vld [vmem:[#allocation10 + $0x10] sm:$0xff]
        %v1107 = vld [vmem:[#allocation10 + $0x18] sm:$0xff]
        %v1108 = vld [vmem:[#allocation10 + $0x20] sm:$0xff]
        %v1109 = vld [vmem:[#allocation10 + $0x28] sm:$0xff]
        %v1110 = vld [vmem:[#allocation10 + $0x30] sm:$0xff]
        %v1111 = vld [vmem:[#allocation10 + $0x38] sm:$0xff]
        %v1112 = vld [vmem:[#allocation10 + $0x40] sm:$0xff]
        %v1113 = vld [vmem:[#allocation10 + $0x48] sm:$0xff]
        %v1114 = vld [vmem:[#allocation10 + $0x50] sm:$0xff]
        %v1115 = vld [vmem:[#allocation10 + $0x58] sm:$0xff]
        %v1116 = vld [vmem:[#allocation10 + $0x60] sm:$0xff]
        %v1117 = vld [vmem:[#allocation10 + $0x68] sm:$0xff]
        %v1118 = vld [vmem:[#allocation10 + $0x70] sm:$0xff]
        %v1119 = vld [vmem:[#allocation10 + $0x78] sm:$0xff]
        %v1120 = vld [vmem:[#allocation10 + $0x80] sm:$0xff]
        %v1121 = vld [vmem:[#allocation10 + $0x88] sm:$0xff]
        %v1122 = vld [vmem:[#allocation10 + $0x90] sm:$0xff]
        %v1123 = vld [vmem:[#allocation10 + $0x98] sm:$0xff]
        %v1124 = vld [vmem:[#allocation10 + $0xa0] sm:$0xff]
        %v1125 = vld [vmem:[#allocation10 + $0xa8] sm:$0xff]
        %v1126 = vld [vmem:[#allocation10 + $0xb0] sm:$0xff]
        %v1127 = vld [vmem:[#allocation10 + $0xb8] sm:$0xff]
        %v1128 = vld [vmem:[#allocation10 + $0xc0] sm:$0xff]
        %v1129 = vld [vmem:[#allocation10 + $0xc8] sm:$0xff]
        %v1130 = vld [vmem:[#allocation10 + $0xd0] sm:$0xff]
        %v1131 = vld [vmem:[#allocation10 + $0xd8] sm:$0xff]
        %v1132 = vld [vmem:[#allocation10 + $0xe0] sm:$0xff]
        %v1133 = vld [vmem:[#allocation10 + $0xe8] sm:$0xff]
        %v1134 = vld [vmem:[#allocation10 + $0xf0] sm:$0xff]
        %v1135 = vld [vmem:[#allocation10 + $0xf8] sm:$0xff]
        %v1136 = vunpack.c.l.bf16 %v1104
        %v1137 = vunpack.c.h.bf16 %v1104
        %v1138 = vunpack.c.l.bf16 %v1105
        %v1139 = vunpack.c.h.bf16 %v1105
        %v1140 = vunpack.c.l.bf16 %v1106
        %v1141 = vunpack.c.h.bf16 %v1106
        %v1142 = vunpack.c.l.bf16 %v1107
        %v1143 = vunpack.c.h.bf16 %v1107
        %v1144 = vunpack.c.l.bf16 %v1108
        %v1145 = vunpack.c.h.bf16 %v1108
        %v1146 = vunpack.c.l.bf16 %v1109
        %v1147 = vunpack.c.h.bf16 %v1109
        %v1148 = vunpack.c.l.bf16 %v1110
        %v1149 = vunpack.c.h.bf16 %v1110
        %v1150 = vunpack.c.l.bf16 %v1111
        %v1151 = vunpack.c.h.bf16 %v1111
        %v1152 = vunpack.c.l.bf16 %v1112
        %v1153 = vunpack.c.h.bf16 %v1112
        %v1154 = vunpack.c.l.bf16 %v1113
        %v1155 = vunpack.c.h.bf16 %v1113
        %v1156 = vunpack.c.l.bf16 %v1114
        %v1157 = vunpack.c.h.bf16 %v1114
        %v1158 = vunpack.c.l.bf16 %v1115
        %v1159 = vunpack.c.h.bf16 %v1115
        %v1160 = vunpack.c.l.bf16 %v1116
        %v1161 = vunpack.c.h.bf16 %v1116
        %v1162 = vunpack.c.l.bf16 %v1117
        %v1163 = vunpack.c.h.bf16 %v1117
        %v1164 = vunpack.c.l.bf16 %v1118
        %v1165 = vunpack.c.h.bf16 %v1118
        %v1166 = vunpack.c.l.bf16 %v1119
        %v1167 = vunpack.c.h.bf16 %v1119
        %v1168 = vunpack.c.l.bf16 %v1120
        %v1169 = vunpack.c.h.bf16 %v1120
        %v1170 = vunpack.c.l.bf16 %v1121
        %v1171 = vunpack.c.h.bf16 %v1121
        %v1172 = vunpack.c.l.bf16 %v1122
        %v1173 = vunpack.c.h.bf16 %v1122
        %v1174 = vunpack.c.l.bf16 %v1123
        %v1175 = vunpack.c.h.bf16 %v1123
        %v1176 = vunpack.c.l.bf16 %v1124
        %v1177 = vunpack.c.h.bf16 %v1124
        %v1178 = vunpack.c.l.bf16 %v1125
        %v1179 = vunpack.c.h.bf16 %v1125
        %v1180 = vunpack.c.l.bf16 %v1126
        %v1181 = vunpack.c.h.bf16 %v1126
        %v1182 = vunpack.c.l.bf16 %v1127
        %v1183 = vunpack.c.h.bf16 %v1127
        %v1184 = vunpack.c.l.bf16 %v1128
        %v1185 = vunpack.c.h.bf16 %v1128
        %v1186 = vunpack.c.l.bf16 %v1129
        %v1187 = vunpack.c.h.bf16 %v1129
        %v1188 = vunpack.c.l.bf16 %v1130
        %v1189 = vunpack.c.h.bf16 %v1130
        %v1190 = vunpack.c.l.bf16 %v1131
        %v1191 = vunpack.c.h.bf16 %v1131
        %v1192 = vunpack.c.l.bf16 %v1132
        %v1193 = vunpack.c.h.bf16 %v1132
        %v1194 = vunpack.c.l.bf16 %v1133
        %v1195 = vunpack.c.h.bf16 %v1133
        %v1196 = vunpack.c.l.bf16 %v1134
        %v1197 = vunpack.c.h.bf16 %v1134
        %v1198 = vunpack.c.l.bf16 %v1135
        %v1199 = vunpack.c.h.bf16 %v1135
        %s1200 = sld [smem:[#allocation8 + %s289]]
        %v1201 = vstv %s1200
        %v1202 = vmul.f32 %v1136, %v1201
        %v1203 = vmul.f32 %v1137, %v1201
        %v1204 = vmul.f32 %v1138, %v1201
        %v1205 = vmul.f32 %v1139, %v1201
        %v1206 = vmul.f32 %v1140, %v1201
        %v1207 = vmul.f32 %v1141, %v1201
        %v1208 = vmul.f32 %v1142, %v1201
        %v1209 = vmul.f32 %v1143, %v1201
        %v1210 = vmul.f32 %v1144, %v1201
        %v1211 = vmul.f32 %v1145, %v1201
        %v1212 = vmul.f32 %v1146, %v1201
        %v1213 = vmul.f32 %v1147, %v1201
        %v1214 = vmul.f32 %v1148, %v1201
        %v1215 = vmul.f32 %v1149, %v1201
        %v1216 = vmul.f32 %v1150, %v1201
        %v1217 = vmul.f32 %v1151, %v1201
        %v1218 = vmul.f32 %v1152, %v1201
        %v1219 = vmul.f32 %v1153, %v1201
        %v1220 = vmul.f32 %v1154, %v1201
        %v1221 = vmul.f32 %v1155, %v1201
        %v1222 = vmul.f32 %v1156, %v1201
        %v1223 = vmul.f32 %v1157, %v1201
        %v1224 = vmul.f32 %v1158, %v1201
        %v1225 = vmul.f32 %v1159, %v1201
        %v1226 = vmul.f32 %v1160, %v1201
        %v1227 = vmul.f32 %v1161, %v1201
        %v1228 = vmul.f32 %v1162, %v1201
        %v1229 = vmul.f32 %v1163, %v1201
        %v1230 = vmul.f32 %v1164, %v1201
        %v1231 = vmul.f32 %v1165, %v1201
        %v1232 = vmul.f32 %v1166, %v1201
        %v1233 = vmul.f32 %v1167, %v1201
        %v1234 = vmul.f32 %v1168, %v1201
        %v1235 = vmul.f32 %v1169, %v1201
        %v1236 = vmul.f32 %v1170, %v1201
        %v1237 = vmul.f32 %v1171, %v1201
        %v1238 = vmul.f32 %v1172, %v1201
        %v1239 = vmul.f32 %v1173, %v1201
        %v1240 = vmul.f32 %v1174, %v1201
        %v1241 = vmul.f32 %v1175, %v1201
        %v1242 = vmul.f32 %v1176, %v1201
        %v1243 = vmul.f32 %v1177, %v1201
        %v1244 = vmul.f32 %v1178, %v1201
        %v1245 = vmul.f32 %v1179, %v1201
        %v1246 = vmul.f32 %v1180, %v1201
        %v1247 = vmul.f32 %v1181, %v1201
        %v1248 = vmul.f32 %v1182, %v1201
        %v1249 = vmul.f32 %v1183, %v1201
        %v1250 = vmul.f32 %v1184, %v1201
        %v1251 = vmul.f32 %v1185, %v1201
        %v1252 = vmul.f32 %v1186, %v1201
        %v1253 = vmul.f32 %v1187, %v1201
        %v1254 = vmul.f32 %v1188, %v1201
        %v1255 = vmul.f32 %v1189, %v1201
        %v1256 = vmul.f32 %v1190, %v1201
        %v1257 = vmul.f32 %v1191, %v1201
        %v1258 = vmul.f32 %v1192, %v1201
        %v1259 = vmul.f32 %v1193, %v1201
        %v1260 = vmul.f32 %v1194, %v1201
        %v1261 = vmul.f32 %v1195, %v1201
        %v1262 = vmul.f32 %v1196, %v1201
        %v1263 = vmul.f32 %v1197, %v1201
        %v1264 = vmul.f32 %v1198, %v1201
        %v1265 = vmul.f32 %v1199, %v1201
        %v1266 = vld [vmem:[%s356] sm:$0xff]
        %v1267 = vld [vmem:[%s356 + $0x8] sm:$0xff]
        %v1268 = vld [vmem:[%s356 + $0x10] sm:$0xff]
        %v1269 = vld [vmem:[%s356 + $0x18] sm:$0xff]
        %v1270 = vld [vmem:[%s356 + $0x20] sm:$0xff]
        %v1271 = vld [vmem:[%s356 + $0x28] sm:$0xff]
        %v1272 = vld [vmem:[%s356 + $0x30] sm:$0xff]
        %v1273 = vld [vmem:[%s356 + $0x38] sm:$0xff]
        %v1274 = vld [vmem:[%s356 + $0x40] sm:$0xff]
        %v1275 = vld [vmem:[%s356 + $0x48] sm:$0xff]
        %v1276 = vld [vmem:[%s356 + $0x50] sm:$0xff]
        %v1277 = vld [vmem:[%s356 + $0x58] sm:$0xff]
        %v1278 = vld [vmem:[%s356 + $0x60] sm:$0xff]
        %v1279 = vld [vmem:[%s356 + $0x68] sm:$0xff]
        %v1280 = vld [vmem:[%s356 + $0x70] sm:$0xff]
        %v1281 = vld [vmem:[%s356 + $0x78] sm:$0xff]
        %v1282 = vld [vmem:[%s356 + $0x80] sm:$0xff]
        %v1283 = vld [vmem:[%s356 + $0x88] sm:$0xff]
        %v1284 = vld [vmem:[%s356 + $0x90] sm:$0xff]
        %v1285 = vld [vmem:[%s356 + $0x98] sm:$0xff]
        %v1286 = vld [vmem:[%s356 + $0xa0] sm:$0xff]
        %v1287 = vld [vmem:[%s356 + $0xa8] sm:$0xff]
        %v1288 = vld [vmem:[%s356 + $0xb0] sm:$0xff]
        %v1289 = vld [vmem:[%s356 + $0xb8] sm:$0xff]
        %v1290 = vld [vmem:[%s356 + $0xc0] sm:$0xff]
        %v1291 = vld [vmem:[%s356 + $0xc8] sm:$0xff]
        %v1292 = vld [vmem:[%s356 + $0xd0] sm:$0xff]
        %v1293 = vld [vmem:[%s356 + $0xd8] sm:$0xff]
        %v1294 = vld [vmem:[%s356 + $0xe0] sm:$0xff]
        %v1295 = vld [vmem:[%s356 + $0xe8] sm:$0xff]
        %v1296 = vld [vmem:[%s356 + $0xf0] sm:$0xff]
        %v1297 = vld [vmem:[%s356 + $0xf8] sm:$0xff]
        %v1298 = vunpack.c.l.bf16 %v1266
        %v1299 = vunpack.c.h.bf16 %v1266
        %v1300 = vunpack.c.l.bf16 %v1267
        %v1301 = vunpack.c.h.bf16 %v1267
        %v1302 = vunpack.c.l.bf16 %v1268
        %v1303 = vunpack.c.h.bf16 %v1268
        %v1304 = vunpack.c.l.bf16 %v1269
        %v1305 = vunpack.c.h.bf16 %v1269
        %v1306 = vunpack.c.l.bf16 %v1270
        %v1307 = vunpack.c.h.bf16 %v1270
        %v1308 = vunpack.c.l.bf16 %v1271
        %v1309 = vunpack.c.h.bf16 %v1271
        %v1310 = vunpack.c.l.bf16 %v1272
        %v1311 = vunpack.c.h.bf16 %v1272
        %v1312 = vunpack.c.l.bf16 %v1273
        %v1313 = vunpack.c.h.bf16 %v1273
        %v1314 = vunpack.c.l.bf16 %v1274
        %v1315 = vunpack.c.h.bf16 %v1274
        %v1316 = vunpack.c.l.bf16 %v1275
        %v1317 = vunpack.c.h.bf16 %v1275
        %v1318 = vunpack.c.l.bf16 %v1276
        %v1319 = vunpack.c.h.bf16 %v1276
        %v1320 = vunpack.c.l.bf16 %v1277
        %v1321 = vunpack.c.h.bf16 %v1277
        %v1322 = vunpack.c.l.bf16 %v1278
        %v1323 = vunpack.c.h.bf16 %v1278
        %v1324 = vunpack.c.l.bf16 %v1279
        %v1325 = vunpack.c.h.bf16 %v1279
        %v1326 = vunpack.c.l.bf16 %v1280
        %v1327 = vunpack.c.h.bf16 %v1280
        %v1328 = vunpack.c.l.bf16 %v1281
        %v1329 = vunpack.c.h.bf16 %v1281
        %v1330 = vunpack.c.l.bf16 %v1282
        %v1331 = vunpack.c.h.bf16 %v1282
        %v1332 = vunpack.c.l.bf16 %v1283
        %v1333 = vunpack.c.h.bf16 %v1283
        %v1334 = vunpack.c.l.bf16 %v1284
        %v1335 = vunpack.c.h.bf16 %v1284
        %v1336 = vunpack.c.l.bf16 %v1285
        %v1337 = vunpack.c.h.bf16 %v1285
        %v1338 = vunpack.c.l.bf16 %v1286
        %v1339 = vunpack.c.h.bf16 %v1286
        %v1340 = vunpack.c.l.bf16 %v1287
        %v1341 = vunpack.c.h.bf16 %v1287
        %v1342 = vunpack.c.l.bf16 %v1288
        %v1343 = vunpack.c.h.bf16 %v1288
        %v1344 = vunpack.c.l.bf16 %v1289
        %v1345 = vunpack.c.h.bf16 %v1289
        %v1346 = vunpack.c.l.bf16 %v1290
        %v1347 = vunpack.c.h.bf16 %v1290
        %v1348 = vunpack.c.l.bf16 %v1291
        %v1349 = vunpack.c.h.bf16 %v1291
        %v1350 = vunpack.c.l.bf16 %v1292
        %v1351 = vunpack.c.h.bf16 %v1292
        %v1352 = vunpack.c.l.bf16 %v1293
        %v1353 = vunpack.c.h.bf16 %v1293
        %v1354 = vunpack.c.l.bf16 %v1294
        %v1355 = vunpack.c.h.bf16 %v1294
        %v1356 = vunpack.c.l.bf16 %v1295
        %v1357 = vunpack.c.h.bf16 %v1295
        %v1358 = vunpack.c.l.bf16 %v1296
        %v1359 = vunpack.c.h.bf16 %v1296
        %v1360 = vunpack.c.l.bf16 %v1297
        %v1361 = vunpack.c.h.bf16 %v1297
        %s1362 = sld [smem:[#allocation8 + %s453]]
        %v1363 = vstv %s1362
        %v1364 = vmul.f32 %v1298, %v1363
        %v1365 = vmul.f32 %v1299, %v1363
        %v1366 = vmul.f32 %v1300, %v1363
        %v1367 = vmul.f32 %v1301, %v1363
        %v1368 = vmul.f32 %v1302, %v1363
        %v1369 = vmul.f32 %v1303, %v1363
        %v1370 = vmul.f32 %v1304, %v1363
        %v1371 = vmul.f32 %v1305, %v1363
        %v1372 = vmul.f32 %v1306, %v1363
        %v1373 = vmul.f32 %v1307, %v1363
        %v1374 = vmul.f32 %v1308, %v1363
        %v1375 = vmul.f32 %v1309, %v1363
        %v1376 = vmul.f32 %v1310, %v1363
        %v1377 = vmul.f32 %v1311, %v1363
        %v1378 = vmul.f32 %v1312, %v1363
        %v1379 = vmul.f32 %v1313, %v1363
        %v1380 = vmul.f32 %v1314, %v1363
        %v1381 = vmul.f32 %v1315, %v1363
        %v1382 = vmul.f32 %v1316, %v1363
        %v1383 = vmul.f32 %v1317, %v1363
        %v1384 = vmul.f32 %v1318, %v1363
        %v1385 = vmul.f32 %v1319, %v1363
        %v1386 = vmul.f32 %v1320, %v1363
        %v1387 = vmul.f32 %v1321, %v1363
        %v1388 = vmul.f32 %v1322, %v1363
        %v1389 = vmul.f32 %v1323, %v1363
        %v1390 = vmul.f32 %v1324, %v1363
        %v1391 = vmul.f32 %v1325, %v1363
        %v1392 = vmul.f32 %v1326, %v1363
        %v1393 = vmul.f32 %v1327, %v1363
        %v1394 = vmul.f32 %v1328, %v1363
        %v1395 = vmul.f32 %v1329, %v1363
        %v1396 = vmul.f32 %v1330, %v1363
        %v1397 = vmul.f32 %v1331, %v1363
        %v1398 = vmul.f32 %v1332, %v1363
        %v1399 = vmul.f32 %v1333, %v1363
        %v1400 = vmul.f32 %v1334, %v1363
        %v1401 = vmul.f32 %v1335, %v1363
        %v1402 = vmul.f32 %v1336, %v1363
        %v1403 = vmul.f32 %v1337, %v1363
        %v1404 = vmul.f32 %v1338, %v1363
        %v1405 = vmul.f32 %v1339, %v1363
        %v1406 = vmul.f32 %v1340, %v1363
        %v1407 = vmul.f32 %v1341, %v1363
        %v1408 = vmul.f32 %v1342, %v1363
        %v1409 = vmul.f32 %v1343, %v1363
        %v1410 = vmul.f32 %v1344, %v1363
        %v1411 = vmul.f32 %v1345, %v1363
        %v1412 = vmul.f32 %v1346, %v1363
        %v1413 = vmul.f32 %v1347, %v1363
        %v1414 = vmul.f32 %v1348, %v1363
        %v1415 = vmul.f32 %v1349, %v1363
        %v1416 = vmul.f32 %v1350, %v1363
        %v1417 = vmul.f32 %v1351, %v1363
        %v1418 = vmul.f32 %v1352, %v1363
        %v1419 = vmul.f32 %v1353, %v1363
        %v1420 = vmul.f32 %v1354, %v1363
        %v1421 = vmul.f32 %v1355, %v1363
        %v1422 = vmul.f32 %v1356, %v1363
        %v1423 = vmul.f32 %v1357, %v1363
        %v1424 = vmul.f32 %v1358, %v1363
        %v1425 = vmul.f32 %v1359, %v1363
        %v1426 = vmul.f32 %v1360, %v1363
        %v1427 = vmul.f32 %v1361, %v1363
        %v1428 = vadd.f32 %v1202, %v1364
        %v1429 = vadd.f32 %v1203, %v1365
        %v1430 = vadd.f32 %v1204, %v1366
        %v1431 = vadd.f32 %v1205, %v1367
        %v1432 = vadd.f32 %v1206, %v1368
        %v1433 = vadd.f32 %v1207, %v1369
        %v1434 = vadd.f32 %v1208, %v1370
        %v1435 = vadd.f32 %v1209, %v1371
        %v1436 = vadd.f32 %v1210, %v1372
        %v1437 = vadd.f32 %v1211, %v1373
        %v1438 = vadd.f32 %v1212, %v1374
        %v1439 = vadd.f32 %v1213, %v1375
        %v1440 = vadd.f32 %v1214, %v1376
        %v1441 = vadd.f32 %v1215, %v1377
        %v1442 = vadd.f32 %v1216, %v1378
        %v1443 = vadd.f32 %v1217, %v1379
        %v1444 = vadd.f32 %v1218, %v1380
        %v1445 = vadd.f32 %v1219, %v1381
        %v1446 = vadd.f32 %v1220, %v1382
        %v1447 = vadd.f32 %v1221, %v1383
        %v1448 = vadd.f32 %v1222, %v1384
        %v1449 = vadd.f32 %v1223, %v1385
        %v1450 = vadd.f32 %v1224, %v1386
        %v1451 = vadd.f32 %v1225, %v1387
        %v1452 = vadd.f32 %v1226, %v1388
        %v1453 = vadd.f32 %v1227, %v1389
        %v1454 = vadd.f32 %v1228, %v1390
        %v1455 = vadd.f32 %v1229, %v1391
        %v1456 = vadd.f32 %v1230, %v1392
        %v1457 = vadd.f32 %v1231, %v1393
        %v1458 = vadd.f32 %v1232, %v1394
        %v1459 = vadd.f32 %v1233, %v1395
        %v1460 = vadd.f32 %v1234, %v1396
        %v1461 = vadd.f32 %v1235, %v1397
        %v1462 = vadd.f32 %v1236, %v1398
        %v1463 = vadd.f32 %v1237, %v1399
        %v1464 = vadd.f32 %v1238, %v1400
        %v1465 = vadd.f32 %v1239, %v1401
        %v1466 = vadd.f32 %v1240, %v1402
        %v1467 = vadd.f32 %v1241, %v1403
        %v1468 = vadd.f32 %v1242, %v1404
        %v1469 = vadd.f32 %v1243, %v1405
        %v1470 = vadd.f32 %v1244, %v1406
        %v1471 = vadd.f32 %v1245, %v1407
        %v1472 = vadd.f32 %v1246, %v1408
        %v1473 = vadd.f32 %v1247, %v1409
        %v1474 = vadd.f32 %v1248, %v1410
        %v1475 = vadd.f32 %v1249, %v1411
        %v1476 = vadd.f32 %v1250, %v1412
        %v1477 = vadd.f32 %v1251, %v1413
        %v1478 = vadd.f32 %v1252, %v1414
        %v1479 = vadd.f32 %v1253, %v1415
        %v1480 = vadd.f32 %v1254, %v1416
        %v1481 = vadd.f32 %v1255, %v1417
        %v1482 = vadd.f32 %v1256, %v1418
        %v1483 = vadd.f32 %v1257, %v1419
        %v1484 = vadd.f32 %v1258, %v1420
        %v1485 = vadd.f32 %v1259, %v1421
        %v1486 = vadd.f32 %v1260, %v1422
        %v1487 = vadd.f32 %v1261, %v1423
        %v1488 = vadd.f32 %v1262, %v1424
        %v1489 = vadd.f32 %v1263, %v1425
        %v1490 = vadd.f32 %v1264, %v1426
        %v1491 = vadd.f32 %v1265, %v1427
        %v1492 = vld [vmem:[%s584] sm:$0xff]
        %v1493 = vld [vmem:[%s584 + $0x8] sm:$0xff]
        %v1494 = vld [vmem:[%s584 + $0x10] sm:$0xff]
        %v1495 = vld [vmem:[%s584 + $0x18] sm:$0xff]
        %v1496 = vld [vmem:[%s584 + $0x20] sm:$0xff]
        %v1497 = vld [vmem:[%s584 + $0x28] sm:$0xff]
        %v1498 = vld [vmem:[%s584 + $0x30] sm:$0xff]
        %v1499 = vld [vmem:[%s584 + $0x38] sm:$0xff]
        %v1500 = vld [vmem:[%s584 + $0x40] sm:$0xff]
        %v1501 = vld [vmem:[%s584 + $0x48] sm:$0xff]
        %v1502 = vld [vmem:[%s584 + $0x50] sm:$0xff]
        %v1503 = vld [vmem:[%s584 + $0x58] sm:$0xff]
        %v1504 = vld [vmem:[%s584 + $0x60] sm:$0xff]
        %v1505 = vld [vmem:[%s584 + $0x68] sm:$0xff]
        %v1506 = vld [vmem:[%s584 + $0x70] sm:$0xff]
        %v1507 = vld [vmem:[%s584 + $0x78] sm:$0xff]
        %v1508 = vld [vmem:[%s584 + $0x80] sm:$0xff]
        %v1509 = vld [vmem:[%s584 + $0x88] sm:$0xff]
        %v1510 = vld [vmem:[%s584 + $0x90] sm:$0xff]
        %v1511 = vld [vmem:[%s584 + $0x98] sm:$0xff]
        %v1512 = vld [vmem:[%s584 + $0xa0] sm:$0xff]
        %v1513 = vld [vmem:[%s584 + $0xa8] sm:$0xff]
        %v1514 = vld [vmem:[%s584 + $0xb0] sm:$0xff]
        %v1515 = vld [vmem:[%s584 + $0xb8] sm:$0xff]
        %v1516 = vld [vmem:[%s584 + $0xc0] sm:$0xff]
        %v1517 = vld [vmem:[%s584 + $0xc8] sm:$0xff]
        %v1518 = vld [vmem:[%s584 + $0xd0] sm:$0xff]
        %v1519 = vld [vmem:[%s584 + $0xd8] sm:$0xff]
        %v1520 = vld [vmem:[%s584 + $0xe0] sm:$0xff]
        %v1521 = vld [vmem:[%s584 + $0xe8] sm:$0xff]
        %v1522 = vld [vmem:[%s584 + $0xf0] sm:$0xff]
        %v1523 = vld [vmem:[%s584 + $0xf8] sm:$0xff]
        %v1524 = vunpack.c.l.bf16 %v1492
        %v1525 = vunpack.c.h.bf16 %v1492
        %v1526 = vunpack.c.l.bf16 %v1493
        %v1527 = vunpack.c.h.bf16 %v1493
        %v1528 = vunpack.c.l.bf16 %v1494
        %v1529 = vunpack.c.h.bf16 %v1494
        %v1530 = vunpack.c.l.bf16 %v1495
        %v1531 = vunpack.c.h.bf16 %v1495
        %v1532 = vunpack.c.l.bf16 %v1496
        %v1533 = vunpack.c.h.bf16 %v1496
        %v1534 = vunpack.c.l.bf16 %v1497
        %v1535 = vunpack.c.h.bf16 %v1497
        %v1536 = vunpack.c.l.bf16 %v1498
        %v1537 = vunpack.c.h.bf16 %v1498
        %v1538 = vunpack.c.l.bf16 %v1499
        %v1539 = vunpack.c.h.bf16 %v1499
        %v1540 = vunpack.c.l.bf16 %v1500
        %v1541 = vunpack.c.h.bf16 %v1500
        %v1542 = vunpack.c.l.bf16 %v1501
        %v1543 = vunpack.c.h.bf16 %v1501
        %v1544 = vunpack.c.l.bf16 %v1502
        %v1545 = vunpack.c.h.bf16 %v1502
        %v1546 = vunpack.c.l.bf16 %v1503
        %v1547 = vunpack.c.h.bf16 %v1503
        %v1548 = vunpack.c.l.bf16 %v1504
        %v1549 = vunpack.c.h.bf16 %v1504
        %v1550 = vunpack.c.l.bf16 %v1505
        %v1551 = vunpack.c.h.bf16 %v1505
        %v1552 = vunpack.c.l.bf16 %v1506
        %v1553 = vunpack.c.h.bf16 %v1506
        %v1554 = vunpack.c.l.bf16 %v1507
        %v1555 = vunpack.c.h.bf16 %v1507
        %v1556 = vunpack.c.l.bf16 %v1508
        %v1557 = vunpack.c.h.bf16 %v1508
        %v1558 = vunpack.c.l.bf16 %v1509
        %v1559 = vunpack.c.h.bf16 %v1509
        %v1560 = vunpack.c.l.bf16 %v1510
        %v1561 = vunpack.c.h.bf16 %v1510
        %v1562 = vunpack.c.l.bf16 %v1511
        %v1563 = vunpack.c.h.bf16 %v1511
        %v1564 = vunpack.c.l.bf16 %v1512
        %v1565 = vunpack.c.h.bf16 %v1512
        %v1566 = vunpack.c.l.bf16 %v1513
        %v1567 = vunpack.c.h.bf16 %v1513
        %v1568 = vunpack.c.l.bf16 %v1514
        %v1569 = vunpack.c.h.bf16 %v1514
        %v1570 = vunpack.c.l.bf16 %v1515
        %v1571 = vunpack.c.h.bf16 %v1515
        %v1572 = vunpack.c.l.bf16 %v1516
        %v1573 = vunpack.c.h.bf16 %v1516
        %v1574 = vunpack.c.l.bf16 %v1517
        %v1575 = vunpack.c.h.bf16 %v1517
        %v1576 = vunpack.c.l.bf16 %v1518
        %v1577 = vunpack.c.h.bf16 %v1518
        %v1578 = vunpack.c.l.bf16 %v1519
        %v1579 = vunpack.c.h.bf16 %v1519
        %v1580 = vunpack.c.l.bf16 %v1520
        %v1581 = vunpack.c.h.bf16 %v1520
        %v1582 = vunpack.c.l.bf16 %v1521
        %v1583 = vunpack.c.h.bf16 %v1521
        %v1584 = vunpack.c.l.bf16 %v1522
        %v1585 = vunpack.c.h.bf16 %v1522
        %v1586 = vunpack.c.l.bf16 %v1523
        %v1587 = vunpack.c.h.bf16 %v1523
        %s1588 = sld [smem:[#allocation8 + %s681]]
        %v1589 = vstv %s1588
        %v1590 = vmul.f32 %v1524, %v1589
        %v1591 = vmul.f32 %v1525, %v1589
        %v1592 = vmul.f32 %v1526, %v1589
        %v1593 = vmul.f32 %v1527, %v1589
        %v1594 = vmul.f32 %v1528, %v1589
        %v1595 = vmul.f32 %v1529, %v1589
        %v1596 = vmul.f32 %v1530, %v1589
        %v1597 = vmul.f32 %v1531, %v1589
        %v1598 = vmul.f32 %v1532, %v1589
        %v1599 = vmul.f32 %v1533, %v1589
        %v1600 = vmul.f32 %v1534, %v1589
        %v1601 = vmul.f32 %v1535, %v1589
        %v1602 = vmul.f32 %v1536, %v1589
        %v1603 = vmul.f32 %v1537, %v1589
        %v1604 = vmul.f32 %v1538, %v1589
        %v1605 = vmul.f32 %v1539, %v1589
        %v1606 = vmul.f32 %v1540, %v1589
        %v1607 = vmul.f32 %v1541, %v1589
        %v1608 = vmul.f32 %v1542, %v1589
        %v1609 = vmul.f32 %v1543, %v1589
        %v1610 = vmul.f32 %v1544, %v1589
        %v1611 = vmul.f32 %v1545, %v1589
        %v1612 = vmul.f32 %v1546, %v1589
        %v1613 = vmul.f32 %v1547, %v1589
        %v1614 = vmul.f32 %v1548, %v1589
        %v1615 = vmul.f32 %v1549, %v1589
        %v1616 = vmul.f32 %v1550, %v1589
        %v1617 = vmul.f32 %v1551, %v1589
        %v1618 = vmul.f32 %v1552, %v1589
        %v1619 = vmul.f32 %v1553, %v1589
        %v1620 = vmul.f32 %v1554, %v1589
        %v1621 = vmul.f32 %v1555, %v1589
        %v1622 = vmul.f32 %v1556, %v1589
        %v1623 = vmul.f32 %v1557, %v1589
        %v1624 = vmul.f32 %v1558, %v1589
        %v1625 = vmul.f32 %v1559, %v1589
        %v1626 = vmul.f32 %v1560, %v1589
        %v1627 = vmul.f32 %v1561, %v1589
        %v1628 = vmul.f32 %v1562, %v1589
        %v1629 = vmul.f32 %v1563, %v1589
        %v1630 = vmul.f32 %v1564, %v1589
        %v1631 = vmul.f32 %v1565, %v1589
        %v1632 = vmul.f32 %v1566, %v1589
        %v1633 = vmul.f32 %v1567, %v1589
        %v1634 = vmul.f32 %v1568, %v1589
        %v1635 = vmul.f32 %v1569, %v1589
        %v1636 = vmul.f32 %v1570, %v1589
        %v1637 = vmul.f32 %v1571, %v1589
        %v1638 = vmul.f32 %v1572, %v1589
        %v1639 = vmul.f32 %v1573, %v1589
        %v1640 = vmul.f32 %v1574, %v1589
        %v1641 = vmul.f32 %v1575, %v1589
        %v1642 = vmul.f32 %v1576, %v1589
        %v1643 = vmul.f32 %v1577, %v1589
        %v1644 = vmul.f32 %v1578, %v1589
        %v1645 = vmul.f32 %v1579, %v1589
        %v1646 = vmul.f32 %v1580, %v1589
        %v1647 = vmul.f32 %v1581, %v1589
        %v1648 = vmul.f32 %v1582, %v1589
        %v1649 = vmul.f32 %v1583, %v1589
        %v1650 = vmul.f32 %v1584, %v1589
        %v1651 = vmul.f32 %v1585, %v1589
        %v1652 = vmul.f32 %v1586, %v1589
        %v1653 = vmul.f32 %v1587, %v1589
        %v1654 = vadd.f32 %v1428, %v1590
        %v1655 = vadd.f32 %v1429, %v1591
        %v1656 = vadd.f32 %v1430, %v1592
        %v1657 = vadd.f32 %v1431, %v1593
        %v1658 = vadd.f32 %v1432, %v1594
        %v1659 = vadd.f32 %v1433, %v1595
        %v1660 = vadd.f32 %v1434, %v1596
        %v1661 = vadd.f32 %v1435, %v1597
        %v1662 = vadd.f32 %v1436, %v1598
        %v1663 = vadd.f32 %v1437, %v1599
        %v1664 = vadd.f32 %v1438, %v1600
        %v1665 = vadd.f32 %v1439, %v1601
        %v1666 = vadd.f32 %v1440, %v1602
        %v1667 = vadd.f32 %v1441, %v1603
        %v1668 = vadd.f32 %v1442, %v1604
        %v1669 = vadd.f32 %v1443, %v1605
        %v1670 = vadd.f32 %v1444, %v1606
        %v1671 = vadd.f32 %v1445, %v1607
        %v1672 = vadd.f32 %v1446, %v1608
        %v1673 = vadd.f32 %v1447, %v1609
        %v1674 = vadd.f32 %v1448, %v1610
        %v1675 = vadd.f32 %v1449, %v1611
        %v1676 = vadd.f32 %v1450, %v1612
        %v1677 = vadd.f32 %v1451, %v1613
        %v1678 = vadd.f32 %v1452, %v1614
        %v1679 = vadd.f32 %v1453, %v1615
        %v1680 = vadd.f32 %v1454, %v1616
        %v1681 = vadd.f32 %v1455, %v1617
        %v1682 = vadd.f32 %v1456, %v1618
        %v1683 = vadd.f32 %v1457, %v1619
        %v1684 = vadd.f32 %v1458, %v1620
        %v1685 = vadd.f32 %v1459, %v1621
        %v1686 = vadd.f32 %v1460, %v1622
        %v1687 = vadd.f32 %v1461, %v1623
        %v1688 = vadd.f32 %v1462, %v1624
        %v1689 = vadd.f32 %v1463, %v1625
        %v1690 = vadd.f32 %v1464, %v1626
        %v1691 = vadd.f32 %v1465, %v1627
        %v1692 = vadd.f32 %v1466, %v1628
        %v1693 = vadd.f32 %v1467, %v1629
        %v1694 = vadd.f32 %v1468, %v1630
        %v1695 = vadd.f32 %v1469, %v1631
        %v1696 = vadd.f32 %v1470, %v1632
        %v1697 = vadd.f32 %v1471, %v1633
        %v1698 = vadd.f32 %v1472, %v1634
        %v1699 = vadd.f32 %v1473, %v1635
        %v1700 = vadd.f32 %v1474, %v1636
        %v1701 = vadd.f32 %v1475, %v1637
        %v1702 = vadd.f32 %v1476, %v1638
        %v1703 = vadd.f32 %v1477, %v1639
        %v1704 = vadd.f32 %v1478, %v1640
        %v1705 = vadd.f32 %v1479, %v1641
        %v1706 = vadd.f32 %v1480, %v1642
        %v1707 = vadd.f32 %v1481, %v1643
        %v1708 = vadd.f32 %v1482, %v1644
        %v1709 = vadd.f32 %v1483, %v1645
        %v1710 = vadd.f32 %v1484, %v1646
        %v1711 = vadd.f32 %v1485, %v1647
        %v1712 = vadd.f32 %v1486, %v1648
        %v1713 = vadd.f32 %v1487, %v1649
        %v1714 = vadd.f32 %v1488, %v1650
        %v1715 = vadd.f32 %v1489, %v1651
        %v1716 = vadd.f32 %v1490, %v1652
        %v1717 = vadd.f32 %v1491, %v1653
        %v1718 = vld [vmem:[%s812] sm:$0xff]
        %v1719 = vld [vmem:[%s812 + $0x8] sm:$0xff]
        %v1720 = vld [vmem:[%s812 + $0x10] sm:$0xff]
        %v1721 = vld [vmem:[%s812 + $0x18] sm:$0xff]
        %v1722 = vld [vmem:[%s812 + $0x20] sm:$0xff]
        %v1723 = vld [vmem:[%s812 + $0x28] sm:$0xff]
        %v1724 = vld [vmem:[%s812 + $0x30] sm:$0xff]
        %v1725 = vld [vmem:[%s812 + $0x38] sm:$0xff]
        %v1726 = vld [vmem:[%s812 + $0x40] sm:$0xff]
        %v1727 = vld [vmem:[%s812 + $0x48] sm:$0xff]
        %v1728 = vld [vmem:[%s812 + $0x50] sm:$0xff]
        %v1729 = vld [vmem:[%s812 + $0x58] sm:$0xff]
        %v1730 = vld [vmem:[%s812 + $0x60] sm:$0xff]
        %v1731 = vld [vmem:[%s812 + $0x68] sm:$0xff]
        %v1732 = vld [vmem:[%s812 + $0x70] sm:$0xff]
        %v1733 = vld [vmem:[%s812 + $0x78] sm:$0xff]
        %v1734 = vld [vmem:[%s812 + $0x80] sm:$0xff]
        %v1735 = vld [vmem:[%s812 + $0x88] sm:$0xff]
        %v1736 = vld [vmem:[%s812 + $0x90] sm:$0xff]
        %v1737 = vld [vmem:[%s812 + $0x98] sm:$0xff]
        %v1738 = vld [vmem:[%s812 + $0xa0] sm:$0xff]
        %v1739 = vld [vmem:[%s812 + $0xa8] sm:$0xff]
        %v1740 = vld [vmem:[%s812 + $0xb0] sm:$0xff]
        %v1741 = vld [vmem:[%s812 + $0xb8] sm:$0xff]
        %v1742 = vld [vmem:[%s812 + $0xc0] sm:$0xff]
        %v1743 = vld [vmem:[%s812 + $0xc8] sm:$0xff]
        %v1744 = vld [vmem:[%s812 + $0xd0] sm:$0xff]
        %v1745 = vld [vmem:[%s812 + $0xd8] sm:$0xff]
        %v1746 = vld [vmem:[%s812 + $0xe0] sm:$0xff]
        %v1747 = vld [vmem:[%s812 + $0xe8] sm:$0xff]
        %v1748 = vld [vmem:[%s812 + $0xf0] sm:$0xff]
        %v1749 = vld [vmem:[%s812 + $0xf8] sm:$0xff]
        %v1750 = vunpack.c.l.bf16 %v1718
        %v1751 = vunpack.c.h.bf16 %v1718
        %v1752 = vunpack.c.l.bf16 %v1719
        %v1753 = vunpack.c.h.bf16 %v1719
        %v1754 = vunpack.c.l.bf16 %v1720
        %v1755 = vunpack.c.h.bf16 %v1720
        %v1756 = vunpack.c.l.bf16 %v1721
        %v1757 = vunpack.c.h.bf16 %v1721
        %v1758 = vunpack.c.l.bf16 %v1722
        %v1759 = vunpack.c.h.bf16 %v1722
        %v1760 = vunpack.c.l.bf16 %v1723
        %v1761 = vunpack.c.h.bf16 %v1723
        %v1762 = vunpack.c.l.bf16 %v1724
        %v1763 = vunpack.c.h.bf16 %v1724
        %v1764 = vunpack.c.l.bf16 %v1725
        %v1765 = vunpack.c.h.bf16 %v1725
        %v1766 = vunpack.c.l.bf16 %v1726
        %v1767 = vunpack.c.h.bf16 %v1726
        %v1768 = vunpack.c.l.bf16 %v1727
        %v1769 = vunpack.c.h.bf16 %v1727
        %v1770 = vunpack.c.l.bf16 %v1728
        %v1771 = vunpack.c.h.bf16 %v1728
        %v1772 = vunpack.c.l.bf16 %v1729
        %v1773 = vunpack.c.h.bf16 %v1729
        %v1774 = vunpack.c.l.bf16 %v1730
        %v1775 = vunpack.c.h.bf16 %v1730
        %v1776 = vunpack.c.l.bf16 %v1731
        %v1777 = vunpack.c.h.bf16 %v1731
        %v1778 = vunpack.c.l.bf16 %v1732
        %v1779 = vunpack.c.h.bf16 %v1732
        %v1780 = vunpack.c.l.bf16 %v1733
        %v1781 = vunpack.c.h.bf16 %v1733
        %v1782 = vunpack.c.l.bf16 %v1734
        %v1783 = vunpack.c.h.bf16 %v1734
        %v1784 = vunpack.c.l.bf16 %v1735
        %v1785 = vunpack.c.h.bf16 %v1735
        %v1786 = vunpack.c.l.bf16 %v1736
        %v1787 = vunpack.c.h.bf16 %v1736
        %v1788 = vunpack.c.l.bf16 %v1737
        %v1789 = vunpack.c.h.bf16 %v1737
        %v1790 = vunpack.c.l.bf16 %v1738
        %v1791 = vunpack.c.h.bf16 %v1738
        %v1792 = vunpack.c.l.bf16 %v1739
        %v1793 = vunpack.c.h.bf16 %v1739
        %v1794 = vunpack.c.l.bf16 %v1740
        %v1795 = vunpack.c.h.bf16 %v1740
        %v1796 = vunpack.c.l.bf16 %v1741
        %v1797 = vunpack.c.h.bf16 %v1741
        %v1798 = vunpack.c.l.bf16 %v1742
        %v1799 = vunpack.c.h.bf16 %v1742
        %v1800 = vunpack.c.l.bf16 %v1743
        %v1801 = vunpack.c.h.bf16 %v1743
        %v1802 = vunpack.c.l.bf16 %v1744
        %v1803 = vunpack.c.h.bf16 %v1744
        %v1804 = vunpack.c.l.bf16 %v1745
        %v1805 = vunpack.c.h.bf16 %v1745
        %v1806 = vunpack.c.l.bf16 %v1746
        %v1807 = vunpack.c.h.bf16 %v1746
        %v1808 = vunpack.c.l.bf16 %v1747
        %v1809 = vunpack.c.h.bf16 %v1747
        %v1810 = vunpack.c.l.bf16 %v1748
        %v1811 = vunpack.c.h.bf16 %v1748
        %v1812 = vunpack.c.l.bf16 %v1749
        %v1813 = vunpack.c.h.bf16 %v1749
        %s1814 = sld [smem:[#allocation8 + %s909]]
        %v1815 = vstv %s1814
        %v1816 = vmul.f32 %v1750, %v1815
        %v1817 = vmul.f32 %v1751, %v1815
        %v1818 = vmul.f32 %v1752, %v1815
        %v1819 = vmul.f32 %v1753, %v1815
        %v1820 = vmul.f32 %v1754, %v1815
        %v1821 = vmul.f32 %v1755, %v1815
        %v1822 = vmul.f32 %v1756, %v1815
        %v1823 = vmul.f32 %v1757, %v1815
        %v1824 = vmul.f32 %v1758, %v1815
        %v1825 = vmul.f32 %v1759, %v1815
        %v1826 = vmul.f32 %v1760, %v1815
        %v1827 = vmul.f32 %v1761, %v1815
        %v1828 = vmul.f32 %v1762, %v1815
        %v1829 = vmul.f32 %v1763, %v1815
        %v1830 = vmul.f32 %v1764, %v1815
        %v1831 = vmul.f32 %v1765, %v1815
        %v1832 = vmul.f32 %v1766, %v1815
        %v1833 = vmul.f32 %v1767, %v1815
        %v1834 = vmul.f32 %v1768, %v1815
        %v1835 = vmul.f32 %v1769, %v1815
        %v1836 = vmul.f32 %v1770, %v1815
        %v1837 = vmul.f32 %v1771, %v1815
        %v1838 = vmul.f32 %v1772, %v1815
        %v1839 = vmul.f32 %v1773, %v1815
        %v1840 = vmul.f32 %v1774, %v1815
        %v1841 = vmul.f32 %v1775, %v1815
        %v1842 = vmul.f32 %v1776, %v1815
        %v1843 = vmul.f32 %v1777, %v1815
        %v1844 = vmul.f32 %v1778, %v1815
        %v1845 = vmul.f32 %v1779, %v1815
        %v1846 = vmul.f32 %v1780, %v1815
        %v1847 = vmul.f32 %v1781, %v1815
        %v1848 = vmul.f32 %v1782, %v1815
        %v1849 = vmul.f32 %v1783, %v1815
        %v1850 = vmul.f32 %v1784, %v1815
        %v1851 = vmul.f32 %v1785, %v1815
        %v1852 = vmul.f32 %v1786, %v1815
        %v1853 = vmul.f32 %v1787, %v1815
        %v1854 = vmul.f32 %v1788, %v1815
        %v1855 = vmul.f32 %v1789, %v1815
        %v1856 = vmul.f32 %v1790, %v1815
        %v1857 = vmul.f32 %v1791, %v1815
        %v1858 = vmul.f32 %v1792, %v1815
        %v1859 = vmul.f32 %v1793, %v1815
        %v1860 = vmul.f32 %v1794, %v1815
        %v1861 = vmul.f32 %v1795, %v1815
        %v1862 = vmul.f32 %v1796, %v1815
        %v1863 = vmul.f32 %v1797, %v1815
        %v1864 = vmul.f32 %v1798, %v1815
        %v1865 = vmul.f32 %v1799, %v1815
        %v1866 = vmul.f32 %v1800, %v1815
        %v1867 = vmul.f32 %v1801, %v1815
        %v1868 = vmul.f32 %v1802, %v1815
        %v1869 = vmul.f32 %v1803, %v1815
        %v1870 = vmul.f32 %v1804, %v1815
        %v1871 = vmul.f32 %v1805, %v1815
        %v1872 = vmul.f32 %v1806, %v1815
        %v1873 = vmul.f32 %v1807, %v1815
        %v1874 = vmul.f32 %v1808, %v1815
        %v1875 = vmul.f32 %v1809, %v1815
        %v1876 = vmul.f32 %v1810, %v1815
        %v1877 = vmul.f32 %v1811, %v1815
        %v1878 = vmul.f32 %v1812, %v1815
        %v1879 = vmul.f32 %v1813, %v1815
        %v1880 = vadd.f32 %v1654, %v1816
        %v1881 = vadd.f32 %v1655, %v1817
        %v1882 = vadd.f32 %v1656, %v1818
        %v1883 = vadd.f32 %v1657, %v1819
        %v1884 = vadd.f32 %v1658, %v1820
        %v1885 = vadd.f32 %v1659, %v1821
        %v1886 = vadd.f32 %v1660, %v1822
        %v1887 = vadd.f32 %v1661, %v1823
        %v1888 = vadd.f32 %v1662, %v1824
        %v1889 = vadd.f32 %v1663, %v1825
        %v1890 = vadd.f32 %v1664, %v1826
        %v1891 = vadd.f32 %v1665, %v1827
        %v1892 = vadd.f32 %v1666, %v1828
        %v1893 = vadd.f32 %v1667, %v1829
        %v1894 = vadd.f32 %v1668, %v1830
        %v1895 = vadd.f32 %v1669, %v1831
        %v1896 = vadd.f32 %v1670, %v1832
        %v1897 = vadd.f32 %v1671, %v1833
        %v1898 = vadd.f32 %v1672, %v1834
        %v1899 = vadd.f32 %v1673, %v1835
        %v1900 = vadd.f32 %v1674, %v1836
        %v1901 = vadd.f32 %v1675, %v1837
        %v1902 = vadd.f32 %v1676, %v1838
        %v1903 = vadd.f32 %v1677, %v1839
        %v1904 = vadd.f32 %v1678, %v1840
        %v1905 = vadd.f32 %v1679, %v1841
        %v1906 = vadd.f32 %v1680, %v1842
        %v1907 = vadd.f32 %v1681, %v1843
        %v1908 = vadd.f32 %v1682, %v1844
        %v1909 = vadd.f32 %v1683, %v1845
        %v1910 = vadd.f32 %v1684, %v1846
        %v1911 = vadd.f32 %v1685, %v1847
        %v1912 = vadd.f32 %v1686, %v1848
        %v1913 = vadd.f32 %v1687, %v1849
        %v1914 = vadd.f32 %v1688, %v1850
        %v1915 = vadd.f32 %v1689, %v1851
        %v1916 = vadd.f32 %v1690, %v1852
        %v1917 = vadd.f32 %v1691, %v1853
        %v1918 = vadd.f32 %v1692, %v1854
        %v1919 = vadd.f32 %v1693, %v1855
        %v1920 = vadd.f32 %v1694, %v1856
        %v1921 = vadd.f32 %v1695, %v1857
        %v1922 = vadd.f32 %v1696, %v1858
        %v1923 = vadd.f32 %v1697, %v1859
        %v1924 = vadd.f32 %v1698, %v1860
        %v1925 = vadd.f32 %v1699, %v1861
        %v1926 = vadd.f32 %v1700, %v1862
        %v1927 = vadd.f32 %v1701, %v1863
        %v1928 = vadd.f32 %v1702, %v1864
        %v1929 = vadd.f32 %v1703, %v1865
        %v1930 = vadd.f32 %v1704, %v1866
        %v1931 = vadd.f32 %v1705, %v1867
        %v1932 = vadd.f32 %v1706, %v1868
        %v1933 = vadd.f32 %v1707, %v1869
        %v1934 = vadd.f32 %v1708, %v1870
        %v1935 = vadd.f32 %v1709, %v1871
        %v1936 = vadd.f32 %v1710, %v1872
        %v1937 = vadd.f32 %v1711, %v1873
        %v1938 = vadd.f32 %v1712, %v1874
        %v1939 = vadd.f32 %v1713, %v1875
        %v1940 = vadd.f32 %v1714, %v1876
        %v1941 = vadd.f32 %v1715, %v1877
        %v1942 = vadd.f32 %v1716, %v1878
        %v1943 = vadd.f32 %v1717, %v1879
        %v1944 = vpack.c.bf16 %v1881, %v1880
        %v1945 = vpack.c.bf16 %v1883, %v1882
        %v1946 = vpack.c.bf16 %v1885, %v1884
        %v1947 = vpack.c.bf16 %v1887, %v1886
        %v1948 = vpack.c.bf16 %v1889, %v1888
        %v1949 = vpack.c.bf16 %v1891, %v1890
        %v1950 = vpack.c.bf16 %v1893, %v1892
        %v1951 = vpack.c.bf16 %v1895, %v1894
        %v1952 = vpack.c.bf16 %v1897, %v1896
        %v1953 = vpack.c.bf16 %v1899, %v1898
        %v1954 = vpack.c.bf16 %v1901, %v1900
        %v1955 = vpack.c.bf16 %v1903, %v1902
        %v1956 = vpack.c.bf16 %v1905, %v1904
        %v1957 = vpack.c.bf16 %v1907, %v1906
        %v1958 = vpack.c.bf16 %v1909, %v1908
        %v1959 = vpack.c.bf16 %v1911, %v1910
        %v1960 = vpack.c.bf16 %v1913, %v1912
        %v1961 = vpack.c.bf16 %v1915, %v1914
        %v1962 = vpack.c.bf16 %v1917, %v1916
        %v1963 = vpack.c.bf16 %v1919, %v1918
        %v1964 = vpack.c.bf16 %v1921, %v1920
        %v1965 = vpack.c.bf16 %v1923, %v1922
        %v1966 = vpack.c.bf16 %v1925, %v1924
        %v1967 = vpack.c.bf16 %v1927, %v1926
        %v1968 = vpack.c.bf16 %v1929, %v1928
        %v1969 = vpack.c.bf16 %v1931, %v1930
        %v1970 = vpack.c.bf16 %v1933, %v1932
        %v1971 = vpack.c.bf16 %v1935, %v1934
        %v1972 = vpack.c.bf16 %v1937, %v1936
        %v1973 = vpack.c.bf16 %v1939, %v1938
        %v1974 = vpack.c.bf16 %v1941, %v1940
        %v1975 = vpack.c.bf16 %v1943, %v1942
        %1976 = vst [vmem:[#allocation3] sm:$0xff] %v1944
        %1977 = vst [vmem:[#allocation3 + $0x8] sm:$0xff] %v1945
        %1978 = vst [vmem:[#allocation3 + $0x10] sm:$0xff] %v1946
        %1979 = vst [vmem:[#allocation3 + $0x18] sm:$0xff] %v1947
        %1980 = vst [vmem:[#allocation3 + $0x20] sm:$0xff] %v1948
        %1981 = vst [vmem:[#allocation3 + $0x28] sm:$0xff] %v1949
        %1982 = vst [vmem:[#allocation3 + $0x30] sm:$0xff] %v1950
        %1983 = vst [vmem:[#allocation3 + $0x38] sm:$0xff] %v1951
        %1984 = vst [vmem:[#allocation3 + $0x40] sm:$0xff] %v1952
        %1985 = vst [vmem:[#allocation3 + $0x48] sm:$0xff] %v1953
        %1986 = vst [vmem:[#allocation3 + $0x50] sm:$0xff] %v1954
        %1987 = vst [vmem:[#allocation3 + $0x58] sm:$0xff] %v1955
        %1988 = vst [vmem:[#allocation3 + $0x60] sm:$0xff] %v1956
        %1989 = vst [vmem:[#allocation3 + $0x68] sm:$0xff] %v1957
        %1990 = vst [vmem:[#allocation3 + $0x70] sm:$0xff] %v1958
        %1991 = vst [vmem:[#allocation3 + $0x78] sm:$0xff] %v1959
        %1992 = vst [vmem:[#allocation3 + $0x80] sm:$0xff] %v1960
        %1993 = vst [vmem:[#allocation3 + $0x88] sm:$0xff] %v1961
        %1994 = vst [vmem:[#allocation3 + $0x90] sm:$0xff] %v1962
        %1995 = vst [vmem:[#allocation3 + $0x98] sm:$0xff] %v1963
        %1996 = vst [vmem:[#allocation3 + $0xa0] sm:$0xff] %v1964
        %1997 = vst [vmem:[#allocation3 + $0xa8] sm:$0xff] %v1965
        %1998 = vst [vmem:[#allocation3 + $0xb0] sm:$0xff] %v1966
        %1999 = vst [vmem:[#allocation3 + $0xb8] sm:$0xff] %v1967
        %2000 = vst [vmem:[#allocation3 + $0xc0] sm:$0xff] %v1968
        %2001 = vst [vmem:[#allocation3 + $0xc8] sm:$0xff] %v1969
        %2002 = vst [vmem:[#allocation3 + $0xd0] sm:$0xff] %v1970
        %2003 = vst [vmem:[#allocation3 + $0xd8] sm:$0xff] %v1971
        %2004 = vst [vmem:[#allocation3 + $0xe0] sm:$0xff] %v1972
        %2005 = vst [vmem:[#allocation3 + $0xe8] sm:$0xff] %v1973
        %2006 = vst [vmem:[#allocation3 + $0xf0] sm:$0xff] %v1974
        %2007 = vst [vmem:[#allocation3 + $0xf8] sm:$0xff] %v1975
        %v2008 = vld [vmem:[#allocation2] sm:$0xff]
        %v2009 = vld [vmem:[#allocation2 + $0x8] sm:$0xff]
        %v2010 = vld [vmem:[#allocation2 + $0x10] sm:$0xff]
        %v2011 = vld [vmem:[#allocation2 + $0x18] sm:$0xff]
        %v2012 = vld [vmem:[#allocation2 + $0x20] sm:$0xff]
        %v2013 = vld [vmem:[#allocation2 + $0x28] sm:$0xff]
        %v2014 = vld [vmem:[#allocation2 + $0x30] sm:$0xff]
        %v2015 = vld [vmem:[#allocation2 + $0x38] sm:$0xff]
        %v2016 = vld [vmem:[#allocation2 + $0x40] sm:$0xff]
        %v2017 = vld [vmem:[#allocation2 + $0x48] sm:$0xff]
        %v2018 = vld [vmem:[#allocation2 + $0x50] sm:$0xff]
        %v2019 = vld [vmem:[#allocation2 + $0x58] sm:$0xff]
        %v2020 = vld [vmem:[#allocation2 + $0x60] sm:$0xff]
        %v2021 = vld [vmem:[#allocation2 + $0x68] sm:$0xff]
        %v2022 = vld [vmem:[#allocation2 + $0x70] sm:$0xff]
        %v2023 = vld [vmem:[#allocation2 + $0x78] sm:$0xff]
        %v2024 = vld [vmem:[#allocation2 + $0x80] sm:$0xff]
        %v2025 = vld [vmem:[#allocation2 + $0x88] sm:$0xff]
        %v2026 = vld [vmem:[#allocation2 + $0x90] sm:$0xff]
        %v2027 = vld [vmem:[#allocation2 + $0x98] sm:$0xff]
        %v2028 = vld [vmem:[#allocation2 + $0xa0] sm:$0xff]
        %v2029 = vld [vmem:[#allocation2 + $0xa8] sm:$0xff]
        %v2030 = vld [vmem:[#allocation2 + $0xb0] sm:$0xff]
        %v2031 = vld [vmem:[#allocation2 + $0xb8] sm:$0xff]
        %v2032 = vld [vmem:[#allocation2 + $0xc0] sm:$0xff]
        %v2033 = vld [vmem:[#allocation2 + $0xc8] sm:$0xff]
        %v2034 = vld [vmem:[#allocation2 + $0xd0] sm:$0xff]
        %v2035 = vld [vmem:[#allocation2 + $0xd8] sm:$0xff]
        %v2036 = vld [vmem:[#allocation2 + $0xe0] sm:$0xff]
        %v2037 = vld [vmem:[#allocation2 + $0xe8] sm:$0xff]
        %v2038 = vld [vmem:[#allocation2 + $0xf0] sm:$0xff]
        %v2039 = vld [vmem:[#allocation2 + $0xf8] sm:$0xff]
        %v2040 = vld [vmem:[#allocation3] sm:$0xff]
        %v2041 = vld [vmem:[#allocation3 + $0x8] sm:$0xff]
        %v2042 = vld [vmem:[#allocation3 + $0x10] sm:$0xff]
        %v2043 = vld [vmem:[#allocation3 + $0x18] sm:$0xff]
        %v2044 = vld [vmem:[#allocation3 + $0x20] sm:$0xff]
        %v2045 = vld [vmem:[#allocation3 + $0x28] sm:$0xff]
        %v2046 = vld [vmem:[#allocation3 + $0x30] sm:$0xff]
        %v2047 = vld [vmem:[#allocation3 + $0x38] sm:$0xff]
        %v2048 = vld [vmem:[#allocation3 + $0x40] sm:$0xff]
        %v2049 = vld [vmem:[#allocation3 + $0x48] sm:$0xff]
        %v2050 = vld [vmem:[#allocation3 + $0x50] sm:$0xff]
        %v2051 = vld [vmem:[#allocation3 + $0x58] sm:$0xff]
        %v2052 = vld [vmem:[#allocation3 + $0x60] sm:$0xff]
        %v2053 = vld [vmem:[#allocation3 + $0x68] sm:$0xff]
        %v2054 = vld [vmem:[#allocation3 + $0x70] sm:$0xff]
        %v2055 = vld [vmem:[#allocation3 + $0x78] sm:$0xff]
        %v2056 = vld [vmem:[#allocation3 + $0x80] sm:$0xff]
        %v2057 = vld [vmem:[#allocation3 + $0x88] sm:$0xff]
        %v2058 = vld [vmem:[#allocation3 + $0x90] sm:$0xff]
        %v2059 = vld [vmem:[#allocation3 + $0x98] sm:$0xff]
        %v2060 = vld [vmem:[#allocation3 + $0xa0] sm:$0xff]
        %v2061 = vld [vmem:[#allocation3 + $0xa8] sm:$0xff]
        %v2062 = vld [vmem:[#allocation3 + $0xb0] sm:$0xff]
        %v2063 = vld [vmem:[#allocation3 + $0xb8] sm:$0xff]
        %v2064 = vld [vmem:[#allocation3 + $0xc0] sm:$0xff]
        %v2065 = vld [vmem:[#allocation3 + $0xc8] sm:$0xff]
        %v2066 = vld [vmem:[#allocation3 + $0xd0] sm:$0xff]
        %v2067 = vld [vmem:[#allocation3 + $0xd8] sm:$0xff]
        %v2068 = vld [vmem:[#allocation3 + $0xe0] sm:$0xff]
        %v2069 = vld [vmem:[#allocation3 + $0xe8] sm:$0xff]
        %v2070 = vld [vmem:[#allocation3 + $0xf0] sm:$0xff]
        %v2071 = vld [vmem:[#allocation3 + $0xf8] sm:$0xff]
        %v2104 = vunpack.c.l.b16 %v2008
        %v2105 = vunpack.c.h.b16 %v2008
        %v2106 = vunpack.c.l.b16 %v2009
        %v2107 = vunpack.c.h.b16 %v2009
        %v2108 = vunpack.c.l.b16 %v2010
        %v2109 = vunpack.c.h.b16 %v2010
        %v2110 = vunpack.c.l.b16 %v2011
        %v2111 = vunpack.c.h.b16 %v2011
        %v2112 = vunpack.c.l.b16 %v2012
        %v2113 = vunpack.c.h.b16 %v2012
        %v2114 = vunpack.c.l.b16 %v2013
        %v2115 = vunpack.c.h.b16 %v2013
        %v2116 = vunpack.c.l.b16 %v2014
        %v2117 = vunpack.c.h.b16 %v2014
        %v2118 = vunpack.c.l.b16 %v2015
        %v2119 = vunpack.c.h.b16 %v2015
        %v2120 = vunpack.c.l.b16 %v2016
        %v2121 = vunpack.c.h.b16 %v2016
        %v2122 = vunpack.c.l.b16 %v2017
        %v2123 = vunpack.c.h.b16 %v2017
        %v2124 = vunpack.c.l.b16 %v2018
        %v2125 = vunpack.c.h.b16 %v2018
        %v2126 = vunpack.c.l.b16 %v2019
        %v2127 = vunpack.c.h.b16 %v2019
        %v2128 = vunpack.c.l.b16 %v2020
        %v2129 = vunpack.c.h.b16 %v2020
        %v2130 = vunpack.c.l.b16 %v2021
        %v2131 = vunpack.c.h.b16 %v2021
        %v2132 = vunpack.c.l.b16 %v2022
        %v2133 = vunpack.c.h.b16 %v2022
        %v2134 = vunpack.c.l.b16 %v2023
        %v2135 = vunpack.c.h.b16 %v2023
        %v2136 = vunpack.c.l.b16 %v2024
        %v2137 = vunpack.c.h.b16 %v2024
        %v2138 = vunpack.c.l.b16 %v2025
        %v2139 = vunpack.c.h.b16 %v2025
        %v2140 = vunpack.c.l.b16 %v2026
        %v2141 = vunpack.c.h.b16 %v2026
        %v2142 = vunpack.c.l.b16 %v2027
        %v2143 = vunpack.c.h.b16 %v2027
        %v2144 = vunpack.c.l.b16 %v2028
        %v2145 = vunpack.c.h.b16 %v2028
        %v2146 = vunpack.c.l.b16 %v2029
        %v2147 = vunpack.c.h.b16 %v2029
        %v2148 = vunpack.c.l.b16 %v2030
        %v2149 = vunpack.c.h.b16 %v2030
        %v2150 = vunpack.c.l.b16 %v2031
        %v2151 = vunpack.c.h.b16 %v2031
        %v2152 = vunpack.c.l.b16 %v2032
        %v2153 = vunpack.c.h.b16 %v2032
        %v2154 = vunpack.c.l.b16 %v2033
        %v2155 = vunpack.c.h.b16 %v2033
        %v2156 = vunpack.c.l.b16 %v2034
        %v2157 = vunpack.c.h.b16 %v2034
        %v2158 = vunpack.c.l.b16 %v2035
        %v2159 = vunpack.c.h.b16 %v2035
        %v2160 = vunpack.c.l.b16 %v2036
        %v2161 = vunpack.c.h.b16 %v2036
        %v2162 = vunpack.c.l.b16 %v2037
        %v2163 = vunpack.c.h.b16 %v2037
        %v2164 = vunpack.c.l.b16 %v2038
        %v2165 = vunpack.c.h.b16 %v2038
        %v2166 = vunpack.c.l.b16 %v2039
        %v2167 = vunpack.c.h.b16 %v2039
        %v2168 = vpack.c.b16 %v2106, %v2104
        %v2169 = vpack.c.b16 %v2107, %v2105
        %v2170 = vpack.c.b16 %v2110, %v2108
        %v2171 = vpack.c.b16 %v2111, %v2109
        %v2172 = vpack.c.b16 %v2114, %v2112
        %v2173 = vpack.c.b16 %v2115, %v2113
        %v2174 = vpack.c.b16 %v2118, %v2116
        %v2175 = vpack.c.b16 %v2119, %v2117
        %v2176 = vpack.c.b16 %v2122, %v2120
        %v2177 = vpack.c.b16 %v2123, %v2121
        %v2178 = vpack.c.b16 %v2126, %v2124
        %v2179 = vpack.c.b16 %v2127, %v2125
        %v2180 = vpack.c.b16 %v2130, %v2128
        %v2181 = vpack.c.b16 %v2131, %v2129
        %v2182 = vpack.c.b16 %v2134, %v2132
        %v2183 = vpack.c.b16 %v2135, %v2133
        %v2184 = vpack.c.b16 %v2138, %v2136
        %v2185 = vpack.c.b16 %v2139, %v2137
        %v2186 = vpack.c.b16 %v2142, %v2140
        %v2187 = vpack.c.b16 %v2143, %v2141
        %v2188 = vpack.c.b16 %v2146, %v2144
        %v2189 = vpack.c.b16 %v2147, %v2145
        %v2190 = vpack.c.b16 %v2150, %v2148
        %v2191 = vpack.c.b16 %v2151, %v2149
        %v2192 = vpack.c.b16 %v2154, %v2152
        %v2193 = vpack.c.b16 %v2155, %v2153
        %v2194 = vpack.c.b16 %v2158, %v2156
        %v2195 = vpack.c.b16 %v2159, %v2157
        %v2196 = vpack.c.b16 %v2162, %v2160
        %v2197 = vpack.c.b16 %v2163, %v2161
        %v2198 = vpack.c.b16 %v2166, %v2164
        %v2199 = vpack.c.b16 %v2167, %v2165
        %v2264 = vunpack.c.l.b16 %v2040
        %v2265 = vunpack.c.h.b16 %v2040
        %v2266 = vunpack.c.l.b16 %v2041
        %v2267 = vunpack.c.h.b16 %v2041
        %v2268 = vunpack.c.l.b16 %v2042
        %v2269 = vunpack.c.h.b16 %v2042
        %v2270 = vunpack.c.l.b16 %v2043
        %v2271 = vunpack.c.h.b16 %v2043
        %v2272 = vunpack.c.l.b16 %v2044
        %v2273 = vunpack.c.h.b16 %v2044
        %v2274 = vunpack.c.l.b16 %v2045
        %v2275 = vunpack.c.h.b16 %v2045
        %v2276 = vunpack.c.l.b16 %v2046
        %v2277 = vunpack.c.h.b16 %v2046
        %v2278 = vunpack.c.l.b16 %v2047
        %v2279 = vunpack.c.h.b16 %v2047
        %v2280 = vunpack.c.l.b16 %v2048
        %v2281 = vunpack.c.h.b16 %v2048
        %v2282 = vunpack.c.l.b16 %v2049
        %v2283 = vunpack.c.h.b16 %v2049
        %v2284 = vunpack.c.l.b16 %v2050
        %v2285 = vunpack.c.h.b16 %v2050
        %v2286 = vunpack.c.l.b16 %v2051
        %v2287 = vunpack.c.h.b16 %v2051
        %v2288 = vunpack.c.l.b16 %v2052
        %v2289 = vunpack.c.h.b16 %v2052
        %v2290 = vunpack.c.l.b16 %v2053
        %v2291 = vunpack.c.h.b16 %v2053
        %v2292 = vunpack.c.l.b16 %v2054
        %v2293 = vunpack.c.h.b16 %v2054
        %v2294 = vunpack.c.l.b16 %v2055
        %v2295 = vunpack.c.h.b16 %v2055
        %v2296 = vunpack.c.l.b16 %v2056
        %v2297 = vunpack.c.h.b16 %v2056
        %v2298 = vunpack.c.l.b16 %v2057
        %v2299 = vunpack.c.h.b16 %v2057
        %v2300 = vunpack.c.l.b16 %v2058
        %v2301 = vunpack.c.h.b16 %v2058
        %v2302 = vunpack.c.l.b16 %v2059
        %v2303 = vunpack.c.h.b16 %v2059
        %v2304 = vunpack.c.l.b16 %v2060
        %v2305 = vunpack.c.h.b16 %v2060
        %v2306 = vunpack.c.l.b16 %v2061
        %v2307 = vunpack.c.h.b16 %v2061
        %v2308 = vunpack.c.l.b16 %v2062
        %v2309 = vunpack.c.h.b16 %v2062
        %v2310 = vunpack.c.l.b16 %v2063
        %v2311 = vunpack.c.h.b16 %v2063
        %v2312 = vunpack.c.l.b16 %v2064
        %v2313 = vunpack.c.h.b16 %v2064
        %v2314 = vunpack.c.l.b16 %v2065
        %v2315 = vunpack.c.h.b16 %v2065
        %v2316 = vunpack.c.l.b16 %v2066
        %v2317 = vunpack.c.h.b16 %v2066
        %v2318 = vunpack.c.l.b16 %v2067
        %v2319 = vunpack.c.h.b16 %v2067
        %v2320 = vunpack.c.l.b16 %v2068
        %v2321 = vunpack.c.h.b16 %v2068
        %v2322 = vunpack.c.l.b16 %v2069
        %v2323 = vunpack.c.h.b16 %v2069
        %v2324 = vunpack.c.l.b16 %v2070
        %v2325 = vunpack.c.h.b16 %v2070
        %v2326 = vunpack.c.l.b16 %v2071
        %v2327 = vunpack.c.h.b16 %v2071
        %v2328 = vpack.c.b16 %v2266, %v2264
        %v2329 = vpack.c.b16 %v2267, %v2265
        %v2330 = vpack.c.b16 %v2270, %v2268
        %v2331 = vpack.c.b16 %v2271, %v2269
        %v2332 = vpack.c.b16 %v2274, %v2272
        %v2333 = vpack.c.b16 %v2275, %v2273
        %v2334 = vpack.c.b16 %v2278, %v2276
        %v2335 = vpack.c.b16 %v2279, %v2277
        %v2336 = vpack.c.b16 %v2282, %v2280
        %v2337 = vpack.c.b16 %v2283, %v2281
        %v2338 = vpack.c.b16 %v2286, %v2284
        %v2339 = vpack.c.b16 %v2287, %v2285
        %v2340 = vpack.c.b16 %v2290, %v2288
        %v2341 = vpack.c.b16 %v2291, %v2289
        %v2342 = vpack.c.b16 %v2294, %v2292
        %v2343 = vpack.c.b16 %v2295, %v2293
        %v2344 = vpack.c.b16 %v2298, %v2296
        %v2345 = vpack.c.b16 %v2299, %v2297
        %v2346 = vpack.c.b16 %v2302, %v2300
        %v2347 = vpack.c.b16 %v2303, %v2301
        %v2348 = vpack.c.b16 %v2306, %v2304
        %v2349 = vpack.c.b16 %v2307, %v2305
        %v2350 = vpack.c.b16 %v2310, %v2308
        %v2351 = vpack.c.b16 %v2311, %v2309
        %v2352 = vpack.c.b16 %v2314, %v2312
        %v2353 = vpack.c.b16 %v2315, %v2313
        %v2354 = vpack.c.b16 %v2318, %v2316
        %v2355 = vpack.c.b16 %v2319, %v2317
        %v2356 = vpack.c.b16 %v2322, %v2320
        %v2357 = vpack.c.b16 %v2323, %v2321
        %v2358 = vpack.c.b16 %v2326, %v2324
        %v2359 = vpack.c.b16 %v2327, %v2325
        %2392 = vmatpush.bf16.msra.mxu0 %v2342
        %2393 = vmatpush.bf16.msra.mxu0 %v2340
        %2394 = vmatpush.bf16.msra.mxu0 %v2338
        %2395 = vmatpush.bf16.msra.mxu0 %v2336
        %2396 = vmatpush.bf16.msra.mxu0 %v2334
        %2397 = vmatpush.bf16.msra.mxu0 %v2332
        %2398 = vmatpush.bf16.msra.mxu0 %v2330
        %2399 = vmatpush.bf16.msra.mxu0 %v2328
        %2400 = vmatmul.bf16.gmra.mxu0 %v2168
        %v2401 = vpop.f32.mrf.mxu0
        %v2402 = vadd.f32 0.0, %v2401
        %v2403 = vpop.f32.mrf.mxu0
        %v2404 = vadd.f32 0.0, %v2403
        %2405 = vmatmul.bf16.gmra.mxu0 %v2170
        %v2406 = vpop.f32.mrf.mxu0
        %v2407 = vadd.f32 0.0, %v2406
        %v2408 = vpop.f32.mrf.mxu0
        %v2409 = vadd.f32 0.0, %v2408
        %2410 = vmatmul.bf16.gmra.mxu0 %v2172
        %v2411 = vpop.f32.mrf.mxu0
        %v2412 = vadd.f32 0.0, %v2411
        %v2413 = vpop.f32.mrf.mxu0
        %v2414 = vadd.f32 0.0, %v2413
        %2415 = vmatmul.bf16.gmra.mxu0 %v2174
        %v2416 = vpop.f32.mrf.mxu0
        %v2417 = vadd.f32 0.0, %v2416
        %v2418 = vpop.f32.mrf.mxu0
        %v2419 = vadd.f32 0.0, %v2418
        %2420 = vmatmul.bf16.gmra.mxu0 %v2176
        %v2421 = vpop.f32.mrf.mxu0
        %v2422 = vadd.f32 0.0, %v2421
        %v2423 = vpop.f32.mrf.mxu0
        %v2424 = vadd.f32 0.0, %v2423
        %2425 = vmatmul.bf16.gmra.mxu0 %v2178
        %v2426 = vpop.f32.mrf.mxu0
        %v2427 = vadd.f32 0.0, %v2426
        %v2428 = vpop.f32.mrf.mxu0
        %v2429 = vadd.f32 0.0, %v2428
        %2430 = vmatmul.bf16.gmra.mxu0 %v2180
        %v2431 = vpop.f32.mrf.mxu0
        %v2432 = vadd.f32 0.0, %v2431
        %v2433 = vpop.f32.mrf.mxu0
        %v2434 = vadd.f32 0.0, %v2433
        %2435 = vmatmul.bf16.gmra.mxu0 %v2182
        %v2436 = vpop.f32.mrf.mxu0
        %v2437 = vadd.f32 0.0, %v2436
        %v2438 = vpop.f32.mrf.mxu0
        %v2439 = vadd.f32 0.0, %v2438
        %2440 = vmatmul.bf16.gmra.mxu0 %v2184
        %v2441 = vpop.f32.mrf.mxu0
        %v2442 = vadd.f32 0.0, %v2441
        %v2443 = vpop.f32.mrf.mxu0
        %v2444 = vadd.f32 0.0, %v2443
        %2445 = vmatmul.bf16.gmra.mxu0 %v2186
        %v2446 = vpop.f32.mrf.mxu0
        %v2447 = vadd.f32 0.0, %v2446
        %v2448 = vpop.f32.mrf.mxu0
        %v2449 = vadd.f32 0.0, %v2448
        %2450 = vmatmul.bf16.gmra.mxu0 %v2188
        %v2451 = vpop.f32.mrf.mxu0
        %v2452 = vadd.f32 0.0, %v2451
        %v2453 = vpop.f32.mrf.mxu0
        %v2454 = vadd.f32 0.0, %v2453
        %2455 = vmatmul.bf16.gmra.mxu0 %v2190
        %v2456 = vpop.f32.mrf.mxu0
        %v2457 = vadd.f32 0.0, %v2456
        %v2458 = vpop.f32.mrf.mxu0
        %v2459 = vadd.f32 0.0, %v2458
        %2460 = vmatmul.bf16.gmra.mxu0 %v2192
        %v2461 = vpop.f32.mrf.mxu0
        %v2462 = vadd.f32 0.0, %v2461
        %v2463 = vpop.f32.mrf.mxu0
        %v2464 = vadd.f32 0.0, %v2463
        %2465 = vmatmul.bf16.gmra.mxu0 %v2194
        %v2466 = vpop.f32.mrf.mxu0
        %v2467 = vadd.f32 0.0, %v2466
        %v2468 = vpop.f32.mrf.mxu0
        %v2469 = vadd.f32 0.0, %v2468
        %2470 = vmatmul.bf16.gmra.mxu0 %v2196
        %v2471 = vpop.f32.mrf.mxu0
        %v2472 = vadd.f32 0.0, %v2471
        %v2473 = vpop.f32.mrf.mxu0
        %v2474 = vadd.f32 0.0, %v2473
        %2475 = vmatmul.bf16.gmra.mxu0 %v2198
        %v2476 = vpop.f32.mrf.mxu0
        %v2477 = vadd.f32 0.0, %v2476
        %v2478 = vpop.f32.mrf.mxu0
        %v2479 = vadd.f32 0.0, %v2478
        %2480 = vdwg.mxu0
        %2481 = vmatpush.bf16.msra.mxu0 %v2358
        %2482 = vmatpush.bf16.msra.mxu0 %v2356
        %2483 = vmatpush.bf16.msra.mxu0 %v2354
        %2484 = vmatpush.bf16.msra.mxu0 %v2352
        %2485 = vmatpush.bf16.msra.mxu0 %v2350
        %2486 = vmatpush.bf16.msra.mxu0 %v2348
        %2487 = vmatpush.bf16.msra.mxu0 %v2346
        %2488 = vmatpush.bf16.msra.mxu0 %v2344
        %2489 = vmatmul.bf16.gmra.mxu0 %v2169
        %v2490 = vpop.f32.mrf.mxu0
        %v2491 = vadd.f32 %v2402, %v2490
        %v2492 = vpop.f32.mrf.mxu0
        %v2493 = vadd.f32 %v2404, %v2492
        %2494 = vmatmul.bf16.gmra.mxu0 %v2171
        %v2495 = vpop.f32.mrf.mxu0
        %v2496 = vadd.f32 %v2407, %v2495
        %v2497 = vpop.f32.mrf.mxu0
        %v2498 = vadd.f32 %v2409, %v2497
        %2499 = vmatmul.bf16.gmra.mxu0 %v2173
        %v2500 = vpop.f32.mrf.mxu0
        %v2501 = vadd.f32 %v2412, %v2500
        %v2502 = vpop.f32.mrf.mxu0
        %v2503 = vadd.f32 %v2414, %v2502
        %2504 = vmatmul.bf16.gmra.mxu0 %v2175
        %v2505 = vpop.f32.mrf.mxu0
        %v2506 = vadd.f32 %v2417, %v2505
        %v2507 = vpop.f32.mrf.mxu0
        %v2508 = vadd.f32 %v2419, %v2507
        %2509 = vmatmul.bf16.gmra.mxu0 %v2177
        %v2510 = vpop.f32.mrf.mxu0
        %v2511 = vadd.f32 %v2422, %v2510
        %v2512 = vpop.f32.mrf.mxu0
        %v2513 = vadd.f32 %v2424, %v2512
        %2514 = vmatmul.bf16.gmra.mxu0 %v2179
        %v2515 = vpop.f32.mrf.mxu0
        %v2516 = vadd.f32 %v2427, %v2515
        %v2517 = vpop.f32.mrf.mxu0
        %v2518 = vadd.f32 %v2429, %v2517
        %2519 = vmatmul.bf16.gmra.mxu0 %v2181
        %v2520 = vpop.f32.mrf.mxu0
        %v2521 = vadd.f32 %v2432, %v2520
        %v2522 = vpop.f32.mrf.mxu0
        %v2523 = vadd.f32 %v2434, %v2522
        %2524 = vmatmul.bf16.gmra.mxu0 %v2183
        %v2525 = vpop.f32.mrf.mxu0
        %v2526 = vadd.f32 %v2437, %v2525
        %v2527 = vpop.f32.mrf.mxu0
        %v2528 = vadd.f32 %v2439, %v2527
        %2529 = vmatmul.bf16.gmra.mxu0 %v2185
        %v2530 = vpop.f32.mrf.mxu0
        %v2531 = vadd.f32 %v2442, %v2530
        %v2532 = vpop.f32.mrf.mxu0
        %v2533 = vadd.f32 %v2444, %v2532
        %2534 = vmatmul.bf16.gmra.mxu0 %v2187
        %v2535 = vpop.f32.mrf.mxu0
        %v2536 = vadd.f32 %v2447, %v2535
        %v2537 = vpop.f32.mrf.mxu0
        %v2538 = vadd.f32 %v2449, %v2537
        %2539 = vmatmul.bf16.gmra.mxu0 %v2189
        %v2540 = vpop.f32.mrf.mxu0
        %v2541 = vadd.f32 %v2452, %v2540
        %v2542 = vpop.f32.mrf.mxu0
        %v2543 = vadd.f32 %v2454, %v2542
        %2544 = vmatmul.bf16.gmra.mxu0 %v2191
        %v2545 = vpop.f32.mrf.mxu0
        %v2546 = vadd.f32 %v2457, %v2545
        %v2547 = vpop.f32.mrf.mxu0
        %v2548 = vadd.f32 %v2459, %v2547
        %2549 = vmatmul.bf16.gmra.mxu0 %v2193
        %v2550 = vpop.f32.mrf.mxu0
        %v2551 = vadd.f32 %v2462, %v2550
        %v2552 = vpop.f32.mrf.mxu0
        %v2553 = vadd.f32 %v2464, %v2552
        %2554 = vmatmul.bf16.gmra.mxu0 %v2195
        %v2555 = vpop.f32.mrf.mxu0
        %v2556 = vadd.f32 %v2467, %v2555
        %v2557 = vpop.f32.mrf.mxu0
        %v2558 = vadd.f32 %v2469, %v2557
        %2559 = vmatmul.bf16.gmra.mxu0 %v2197
        %v2560 = vpop.f32.mrf.mxu0
        %v2561 = vadd.f32 %v2472, %v2560
        %v2562 = vpop.f32.mrf.mxu0
        %v2563 = vadd.f32 %v2474, %v2562
        %2564 = vmatmul.bf16.gmra.mxu0 %v2199
        %v2565 = vpop.f32.mrf.mxu0
        %v2566 = vadd.f32 %v2477, %v2565
        %v2567 = vpop.f32.mrf.mxu0
        %v2568 = vadd.f32 %v2479, %v2567
        %2569 = vdwg.mxu0
        %2570 = vmatpush.bf16.msra.mxu0 %v2343
        %2571 = vmatpush.bf16.msra.mxu0 %v2341
        %2572 = vmatpush.bf16.msra.mxu0 %v2339
        %2573 = vmatpush.bf16.msra.mxu0 %v2337
        %2574 = vmatpush.bf16.msra.mxu0 %v2335
        %2575 = vmatpush.bf16.msra.mxu0 %v2333
        %2576 = vmatpush.bf16.msra.mxu0 %v2331
        %2577 = vmatpush.bf16.msra.mxu0 %v2329
        %2578 = vmatmul.bf16.gmra.mxu0 %v2168
        %v2579 = vpop.f32.mrf.mxu0
        %v2580 = vadd.f32 0.0, %v2579
        %v2581 = vpop.f32.mrf.mxu0
        %v2582 = vadd.f32 0.0, %v2581
        %2583 = vmatmul.bf16.gmra.mxu0 %v2170
        %v2584 = vpop.f32.mrf.mxu0
        %v2585 = vadd.f32 0.0, %v2584
        %v2586 = vpop.f32.mrf.mxu0
        %v2587 = vadd.f32 0.0, %v2586
        %2588 = vmatmul.bf16.gmra.mxu0 %v2172
        %v2589 = vpop.f32.mrf.mxu0
        %v2590 = vadd.f32 0.0, %v2589
        %v2591 = vpop.f32.mrf.mxu0
        %v2592 = vadd.f32 0.0, %v2591
        %2593 = vmatmul.bf16.gmra.mxu0 %v2174
        %v2594 = vpop.f32.mrf.mxu0
        %v2595 = vadd.f32 0.0, %v2594
        %v2596 = vpop.f32.mrf.mxu0
        %v2597 = vadd.f32 0.0, %v2596
        %2598 = vmatmul.bf16.gmra.mxu0 %v2176
        %v2599 = vpop.f32.mrf.mxu0
        %v2600 = vadd.f32 0.0, %v2599
        %v2601 = vpop.f32.mrf.mxu0
        %v2602 = vadd.f32 0.0, %v2601
        %2603 = vmatmul.bf16.gmra.mxu0 %v2178
        %v2604 = vpop.f32.mrf.mxu0
        %v2605 = vadd.f32 0.0, %v2604
        %v2606 = vpop.f32.mrf.mxu0
        %v2607 = vadd.f32 0.0, %v2606
        %2608 = vmatmul.bf16.gmra.mxu0 %v2180
        %v2609 = vpop.f32.mrf.mxu0
        %v2610 = vadd.f32 0.0, %v2609
        %v2611 = vpop.f32.mrf.mxu0
        %v2612 = vadd.f32 0.0, %v2611
        %2613 = vmatmul.bf16.gmra.mxu0 %v2182
        %v2614 = vpop.f32.mrf.mxu0
        %v2615 = vadd.f32 0.0, %v2614
        %v2616 = vpop.f32.mrf.mxu0
        %v2617 = vadd.f32 0.0, %v2616
        %2618 = vmatmul.bf16.gmra.mxu0 %v2184
        %v2619 = vpop.f32.mrf.mxu0
        %v2620 = vadd.f32 0.0, %v2619
        %v2621 = vpop.f32.mrf.mxu0
        %v2622 = vadd.f32 0.0, %v2621
        %2623 = vmatmul.bf16.gmra.mxu0 %v2186
        %v2624 = vpop.f32.mrf.mxu0
        %v2625 = vadd.f32 0.0, %v2624
        %v2626 = vpop.f32.mrf.mxu0
        %v2627 = vadd.f32 0.0, %v2626
        %2628 = vmatmul.bf16.gmra.mxu0 %v2188
        %v2629 = vpop.f32.mrf.mxu0
        %v2630 = vadd.f32 0.0, %v2629
        %v2631 = vpop.f32.mrf.mxu0
        %v2632 = vadd.f32 0.0, %v2631
        %2633 = vmatmul.bf16.gmra.mxu0 %v2190
        %v2634 = vpop.f32.mrf.mxu0
        %v2635 = vadd.f32 0.0, %v2634
        %v2636 = vpop.f32.mrf.mxu0
        %v2637 = vadd.f32 0.0, %v2636
        %2638 = vmatmul.bf16.gmra.mxu0 %v2192
        %v2639 = vpop.f32.mrf.mxu0
        %v2640 = vadd.f32 0.0, %v2639
        %v2641 = vpop.f32.mrf.mxu0
        %v2642 = vadd.f32 0.0, %v2641
        %2643 = vmatmul.bf16.gmra.mxu0 %v2194
        %v2644 = vpop.f32.mrf.mxu0
        %v2645 = vadd.f32 0.0, %v2644
        %v2646 = vpop.f32.mrf.mxu0
        %v2647 = vadd.f32 0.0, %v2646
        %2648 = vmatmul.bf16.gmra.mxu0 %v2196
        %v2649 = vpop.f32.mrf.mxu0
        %v2650 = vadd.f32 0.0, %v2649
        %v2651 = vpop.f32.mrf.mxu0
        %v2652 = vadd.f32 0.0, %v2651
        %2653 = vmatmul.bf16.gmra.mxu0 %v2198
        %v2654 = vpop.f32.mrf.mxu0
        %v2655 = vadd.f32 0.0, %v2654
        %v2656 = vpop.f32.mrf.mxu0
        %v2657 = vadd.f32 0.0, %v2656
        %2658 = vdwg.mxu0
        %2659 = vmatpush.bf16.msra.mxu0 %v2359
        %2660 = vmatpush.bf16.msra.mxu0 %v2357
        %2661 = vmatpush.bf16.msra.mxu0 %v2355
        %2662 = vmatpush.bf16.msra.mxu0 %v2353
        %2663 = vmatpush.bf16.msra.mxu0 %v2351
        %2664 = vmatpush.bf16.msra.mxu0 %v2349
        %2665 = vmatpush.bf16.msra.mxu0 %v2347
        %2666 = vmatpush.bf16.msra.mxu0 %v2345
        %2667 = vmatmul.bf16.gmra.mxu0 %v2169
        %v2668 = vpop.f32.mrf.mxu0
        %v2669 = vadd.f32 %v2580, %v2668
        %v2670 = vpop.f32.mrf.mxu0
        %v2671 = vadd.f32 %v2582, %v2670
        %2672 = vmatmul.bf16.gmra.mxu0 %v2171
        %v2673 = vpop.f32.mrf.mxu0
        %v2674 = vadd.f32 %v2585, %v2673
        %v2675 = vpop.f32.mrf.mxu0
        %v2676 = vadd.f32 %v2587, %v2675
        %2677 = vmatmul.bf16.gmra.mxu0 %v2173
        %v2678 = vpop.f32.mrf.mxu0
        %v2679 = vadd.f32 %v2590, %v2678
        %v2680 = vpop.f32.mrf.mxu0
        %v2681 = vadd.f32 %v2592, %v2680
        %2682 = vmatmul.bf16.gmra.mxu0 %v2175
        %v2683 = vpop.f32.mrf.mxu0
        %v2684 = vadd.f32 %v2595, %v2683
        %v2685 = vpop.f32.mrf.mxu0
        %v2686 = vadd.f32 %v2597, %v2685
        %2687 = vmatmul.bf16.gmra.mxu0 %v2177
        %v2688 = vpop.f32.mrf.mxu0
        %v2689 = vadd.f32 %v2600, %v2688
        %v2690 = vpop.f32.mrf.mxu0
        %v2691 = vadd.f32 %v2602, %v2690
        %2692 = vmatmul.bf16.gmra.mxu0 %v2179
        %v2693 = vpop.f32.mrf.mxu0
        %v2694 = vadd.f32 %v2605, %v2693
        %v2695 = vpop.f32.mrf.mxu0
        %v2696 = vadd.f32 %v2607, %v2695
        %2697 = vmatmul.bf16.gmra.mxu0 %v2181
        %v2698 = vpop.f32.mrf.mxu0
        %v2699 = vadd.f32 %v2610, %v2698
        %v2700 = vpop.f32.mrf.mxu0
        %v2701 = vadd.f32 %v2612, %v2700
        %2702 = vmatmul.bf16.gmra.mxu0 %v2183
        %v2703 = vpop.f32.mrf.mxu0
        %v2704 = vadd.f32 %v2615, %v2703
        %v2705 = vpop.f32.mrf.mxu0
        %v2706 = vadd.f32 %v2617, %v2705
        %2707 = vmatmul.bf16.gmra.mxu0 %v2185
        %v2708 = vpop.f32.mrf.mxu0
        %v2709 = vadd.f32 %v2620, %v2708
        %v2710 = vpop.f32.mrf.mxu0
        %v2711 = vadd.f32 %v2622, %v2710
        %2712 = vmatmul.bf16.gmra.mxu0 %v2187
        %v2713 = vpop.f32.mrf.mxu0
        %v2714 = vadd.f32 %v2625, %v2713
        %v2715 = vpop.f32.mrf.mxu0
        %v2716 = vadd.f32 %v2627, %v2715
        %2717 = vmatmul.bf16.gmra.mxu0 %v2189
        %v2718 = vpop.f32.mrf.mxu0
        %v2719 = vadd.f32 %v2630, %v2718
        %v2720 = vpop.f32.mrf.mxu0
        %v2721 = vadd.f32 %v2632, %v2720
        %2722 = vmatmul.bf16.gmra.mxu0 %v2191
        %v2723 = vpop.f32.mrf.mxu0
        %v2724 = vadd.f32 %v2635, %v2723
        %v2725 = vpop.f32.mrf.mxu0
        %v2726 = vadd.f32 %v2637, %v2725
        %2727 = vmatmul.bf16.gmra.mxu0 %v2193
        %v2728 = vpop.f32.mrf.mxu0
        %v2729 = vadd.f32 %v2640, %v2728
        %v2730 = vpop.f32.mrf.mxu0
        %v2731 = vadd.f32 %v2642, %v2730
        %2732 = vmatmul.bf16.gmra.mxu0 %v2195
        %v2733 = vpop.f32.mrf.mxu0
        %v2734 = vadd.f32 %v2645, %v2733
        %v2735 = vpop.f32.mrf.mxu0
        %v2736 = vadd.f32 %v2647, %v2735
        %2737 = vmatmul.bf16.gmra.mxu0 %v2197
        %v2738 = vpop.f32.mrf.mxu0
        %v2739 = vadd.f32 %v2650, %v2738
        %v2740 = vpop.f32.mrf.mxu0
        %v2741 = vadd.f32 %v2652, %v2740
        %2742 = vmatmul.bf16.gmra.mxu0 %v2199
        %v2743 = vpop.f32.mrf.mxu0
        %v2744 = vadd.f32 %v2655, %v2743
        %v2745 = vpop.f32.mrf.mxu0
        %v2746 = vadd.f32 %v2657, %v2745
        %2747 = vdwg.mxu0
        %v2748 = vpack.c.bf16 %v2669, %v2491
        %v2749 = vpack.c.bf16 %v2671, %v2493
        %v2750 = vpack.c.bf16 %v2674, %v2496
        %v2751 = vpack.c.bf16 %v2676, %v2498
        %v2752 = vpack.c.bf16 %v2679, %v2501
        %v2753 = vpack.c.bf16 %v2681, %v2503
        %v2754 = vpack.c.bf16 %v2684, %v2506
        %v2755 = vpack.c.bf16 %v2686, %v2508
        %v2756 = vpack.c.bf16 %v2689, %v2511
        %v2757 = vpack.c.bf16 %v2691, %v2513
        %v2758 = vpack.c.bf16 %v2694, %v2516
        %v2759 = vpack.c.bf16 %v2696, %v2518
        %v2760 = vpack.c.bf16 %v2699, %v2521
        %v2761 = vpack.c.bf16 %v2701, %v2523
        %v2762 = vpack.c.bf16 %v2704, %v2526
        %v2763 = vpack.c.bf16 %v2706, %v2528
        %v2764 = vpack.c.bf16 %v2709, %v2531
        %v2765 = vpack.c.bf16 %v2711, %v2533
        %v2766 = vpack.c.bf16 %v2714, %v2536
        %v2767 = vpack.c.bf16 %v2716, %v2538
        %v2768 = vpack.c.bf16 %v2719, %v2541
        %v2769 = vpack.c.bf16 %v2721, %v2543
        %v2770 = vpack.c.bf16 %v2724, %v2546
        %v2771 = vpack.c.bf16 %v2726, %v2548
        %v2772 = vpack.c.bf16 %v2729, %v2551
        %v2773 = vpack.c.bf16 %v2731, %v2553
        %v2774 = vpack.c.bf16 %v2734, %v2556
        %v2775 = vpack.c.bf16 %v2736, %v2558
        %v2776 = vpack.c.bf16 %v2739, %v2561
        %v2777 = vpack.c.bf16 %v2741, %v2563
        %v2778 = vpack.c.bf16 %v2744, %v2566
        %v2779 = vpack.c.bf16 %v2746, %v2568
        %2780 = vst [vmem:[%s192] sm:$0xff] %v2748
        %2781 = vst [vmem:[%s192 + $0x8] sm:$0xff] %v2749
        %2782 = vst [vmem:[%s192 + $0x10] sm:$0xff] %v2750
        %2783 = vst [vmem:[%s192 + $0x18] sm:$0xff] %v2751
        %2784 = vst [vmem:[%s192 + $0x20] sm:$0xff] %v2752
        %2785 = vst [vmem:[%s192 + $0x28] sm:$0xff] %v2753
        %2786 = vst [vmem:[%s192 + $0x30] sm:$0xff] %v2754
        %2787 = vst [vmem:[%s192 + $0x38] sm:$0xff] %v2755
        %2788 = vst [vmem:[%s192 + $0x40] sm:$0xff] %v2756
        %2789 = vst [vmem:[%s192 + $0x48] sm:$0xff] %v2757
        %2790 = vst [vmem:[%s192 + $0x50] sm:$0xff] %v2758
        %2791 = vst [vmem:[%s192 + $0x58] sm:$0xff] %v2759
        %2792 = vst [vmem:[%s192 + $0x60] sm:$0xff] %v2760
        %2793 = vst [vmem:[%s192 + $0x68] sm:$0xff] %v2761
        %2794 = vst [vmem:[%s192 + $0x70] sm:$0xff] %v2762
        %2795 = vst [vmem:[%s192 + $0x78] sm:$0xff] %v2763
        %2796 = vst [vmem:[%s192 + $0x80] sm:$0xff] %v2764
        %2797 = vst [vmem:[%s192 + $0x88] sm:$0xff] %v2765
        %2798 = vst [vmem:[%s192 + $0x90] sm:$0xff] %v2766
        %2799 = vst [vmem:[%s192 + $0x98] sm:$0xff] %v2767
        %2800 = vst [vmem:[%s192 + $0xa0] sm:$0xff] %v2768
        %2801 = vst [vmem:[%s192 + $0xa8] sm:$0xff] %v2769
        %2802 = vst [vmem:[%s192 + $0xb0] sm:$0xff] %v2770
        %2803 = vst [vmem:[%s192 + $0xb8] sm:$0xff] %v2771
        %2804 = vst [vmem:[%s192 + $0xc0] sm:$0xff] %v2772
        %2805 = vst [vmem:[%s192 + $0xc8] sm:$0xff] %v2773
        %2806 = vst [vmem:[%s192 + $0xd0] sm:$0xff] %v2774
        %2807 = vst [vmem:[%s192 + $0xd8] sm:$0xff] %v2775
        %2808 = vst [vmem:[%s192 + $0xe0] sm:$0xff] %v2776
        %2809 = vst [vmem:[%s192 + $0xe8] sm:$0xff] %v2777
        %2810 = vst [vmem:[%s192 + $0xf0] sm:$0xff] %v2778
        %2811 = vst [vmem:[%s192 + $0xf8] sm:$0xff] %v2779
        %s2812 = sand.u32 %s91, 1
        %s2813 = scalar_lea.sflag [#allocation6], %s2812
        %s2814 = sand.u32 %s91, 1
        %s2815 = smul.addr %s2814, 256
        %s2816 = scalar_lea.vmem [#allocation11], %s2815
        // Predicated region
        $region45: #{tpu_custom_call.1} parent=31 // pred_check
          %p2817 = pneg %p101
        $region46: #{tpu_custom_call.1} parent=31 // pred_check_branch
          %2819 = sbr.rel (%p2817) target = $region48
        $region47: #{tpu_custom_call.1} parent=31 // pred_region
          %2821 = vsyncadd %s2813, 0
          %s2822 = smul.addr %s20, 64
          %s2823 = smul.addr %s2822, 4
          %s2824 = scalar_lea.hbm %s3, %s2823
          %s2825 = sshll.u32 %s2816, 4
          %s2826 = int_to_ptr.vmem [resolvable:$true] %s2825
          %s2827 = sshll.u32 %s2824, 4
          %s2828 = int_to_ptr.hbm [resolvable:$true] %s2827
          %2833 = dma.vmem_to_hbm [thread:$0]  %s2826, 4096, %s2828, %s2813, 128, 128, 8
        $region48: #{tpu_custom_call.1} parent=31 // pred_fallthru
          _
      $region32: #{tpu_custom_call.1} parent=5 // pred_fallthru
        _
      %p2834 = scmp.le.s32.totalorder 2, %s15
      // Predicated region
      $region49: #{tpu_custom_call.1} parent=5 // pred_check
        %p2835 = pneg %p2834
      $region50: #{tpu_custom_call.1} parent=5 // pred_check_branch
        %2837 = sbr.rel (%p2835) target = $region52
      $region51: #{tpu_custom_call.1} parent=5 // pred_region
        %s2838 = ssub.s32 %s15, 2
        // Predicated region
        $region53: #{tpu_custom_call.1} parent=51 // pred_check
          %p2839 = pneg %p107
        $region54: #{tpu_custom_call.1} parent=51 // pred_check_branch
          %2841 = sbr.rel (%p2839) target = $region56
        $region55: #{tpu_custom_call.1} parent=51 // pred_region
          %s2842 = sand.u32 %s92, 1
          %s2843 = scalar_lea.sflag [#allocation6], %s2842
          %s2844 = sand.u32 %s92, 1
          %s2845 = smul.addr %s2844, 256
          %s2846 = scalar_lea.vmem [#allocation11], %s2845
          %2848 = dma.done %s2843, 4096
        $region56: #{tpu_custom_call.1} parent=51 // pred_fallthru
          _
      $region52: #{tpu_custom_call.1} parent=5 // pred_fallthru
        _
    $region6: #{tpu_custom_call.1} parent=1 // loop_footer
      %s19 = sadd.s32 1, %s15
    $region7: #{tpu_custom_call.1} parent=1 // loop_footer_branch
      %14 = sbr.rel target = $region3
    $region8: #{tpu_custom_call.1} parent=1 // loop_exit
      _
    %2849 = vsyncpa [#allocation5], 1
    %s2850 = scalar_lea.sflag [#allocation5], 1
    %2851 = vsyncpa %s2850, 1
    %2852 = vsyncpa [#allocation6], 1
    %s2853 = scalar_lea.sflag [#allocation6], 1
    %2854 = vsyncpa %s2853, 1
    %2855 = vsyncpa [#allocation7], 1
    %s2856 = scalar_lea.sflag [#allocation7], 1
    %2857 = vsyncpa %s2856, 1
    %2858 = vsyncpa [#allocation9], 1

</llo_original>
